<compile_context>
chip_gen: v5e
topology: v5e:2x2
jax: 0.10.0
libtpu: 0.0.40
codegen_flags: <defaults>
</compile_context>

<pallas_src>
import numpy as np
import jax
import jax.numpy as jnp
from jax.experimental import pallas as pl
from jax.experimental.pallas import tpu as pltpu

# ---------------- config (small, consistent with the module) ----------------
NUM_LAYERS = 2
NUM_HEADS = 4
VOCAB_SIZE = 64
VOCAB_PAD = 128                 # lane-dense output / unembed padding
HIDDEN = 32
MAX_SEQ_LEN = 16
SEQ = 8
BATCH = 2
HEAD_DIM = HIDDEN // NUM_HEADS
ROWS = BATCH * SEQ              # merged (batch * seq) row axis inside the kernel
LN_EPS = 1e-5
NEG_INF = -1e9
ATTN_SCALE = 1.0 / float(HEAD_DIM) ** 0.5
VEC_W = 4 * HIDDEN              # 128: width of packed bias / LN-vector rows

# Row offsets inside the packed 32-wide table operand.
TAB_EMB = 0
TAB_POS = VOCAB_SIZE
TAB_MASK = VOCAB_SIZE + ROWS
TAB_ROWS = VOCAB_SIZE + 2 * ROWS

# Row indices inside each layer's packed vector block.
V_BQKV, V_BO, V_LN1W, V_LN1B, V_B1, V_B2, V_LN2W, V_LN2B = range(8)


# ---------------------------- shared math helpers ----------------------------
def _layernorm(x, w, b, eps=LN_EPS):
    mean = jnp.mean(x, axis=-1, keepdims=True)
    var = jnp.mean((x - mean) ** 2, axis=-1, keepdims=True)   # unbiased=False
    return (x - mean) * jax.lax.rsqrt(var + eps) * w + b      # rsqrt -> EUP


def _gelu(x):
    c = np.float32(np.sqrt(2.0 / np.pi))
    return x * 0.5 * (1.0 + jnp.tanh(c * (x + 0.044715 * x * x * x)))


def _softmax_ref(s):                    # reference-side softmax (exact divide)
    s = s - jnp.max(s, axis=-1, keepdims=True)
    e = jnp.exp(s)
    return e / jnp.sum(e, axis=-1, keepdims=True)


# --------------------------- fused transformer kernel ------------------------
def fused_transformer_kernel(ids_ref, tab_ref, wA_ref, w2_ref, vec_ref,
                             embT_ref, out_ref):
    # ---- unpack the 32-wide table: embedding, tiled pos-enc, mask bias ----
    tab = tab_ref[...]                                         # (TAB_ROWS, 32)
    emb = tab[TAB_EMB:TAB_EMB + VOCAB_SIZE, :]                 # (64, 32)
    pos = tab[TAB_POS:TAB_POS + ROWS, :]                       # (16, 32)
    mask_bias = tab[TAB_MASK:TAB_MASK + ROWS, :ROWS]           # (16, 16) 0 / -1e9

    # ---- fused embedding gather (one-hot matmul) + positional add ----------
    ids = ids_ref[...]                                         # (16, 1) int32
    onehot = (ids == jax.lax.broadcasted_iota(jnp.int32, (ROWS, VOCAB_SIZE), 1)
              ).astype(jnp.float32)                            # (16, 64)
    x = jnp.dot(onehot, emb, preferred_element_type=jnp.float32) + pos   # (16, 32)
    # Dropout after pos-enc: identity (eval semantics).

    for l in range(NUM_LAYERS):          # static unroll; everything is in VMEM
        wA = wA_ref[l]                                         # (32, 256)
        vl = vec_ref[l]                                        # (8, 128)
        w_qkv = wA[:, :3 * HIDDEN]                             # (32, 96) scale folded
        w_o = wA[:, 3 * HIDDEN:4 * HIDDEN]                     # (32, 32)
        w_1 = wA[:, 4 * HIDDEN:]                               # (32, 128)
        w_2 = w2_ref[l]                                        # (128, 32)

        b_qkv = vl[V_BQKV:V_BQKV + 1, :3 * HIDDEN]             # (1, 96)
        b_o = vl[V_BO:V_BO + 1, :HIDDEN]
        ln1w = vl[V_LN1W:V_LN1W + 1, :HIDDEN]
        ln1b = vl[V_LN1B:V_LN1B + 1, :HIDDEN]
        b_1 = vl[V_B1:V_B1 + 1, :]                             # (1, 128)
        b_2 = vl[V_B2:V_B2 + 1, :HIDDEN]
        ln2w = vl[V_LN2W:V_LN2W + 1, :HIDDEN]
        ln2b = vl[V_LN2B:V_LN2B + 1, :HIDDEN]

        # ---- attention: one dense QKV matmul, per-head static lane slices ----
        qkv = jnp.dot(x, w_qkv, preferred_element_type=jnp.float32) + b_qkv  # (16,96)

        z_heads = []
        for h in range(NUM_HEADS):
            qh = qkv[:, h * HEAD_DIM:(h + 1) * HEAD_DIM]                       # (16,8)
            kh = qkv[:, HIDDEN + h * HEAD_DIM:HIDDEN + (h + 1) * HEAD_DIM]
            vh = qkv[:, 2 * HIDDEN + h * HEAD_DIM:2 * HIDDEN + (h + 1) * HEAD_DIM]
            # scores (already scaled via W_Q) + additive causal/same-seq bias
            s = jax.lax.dot_general(qh, kh, (((1,), (1,)), ((), ())),
                                    preferred_element_type=jnp.float32) + mask_bias
            s = s - jnp.max(s, axis=-1, keepdims=True)
            e = jnp.exp(s)
            p = e * pl.reciprocal(jnp.sum(e, axis=-1, keepdims=True), approx=True)
            z_heads.append(jnp.dot(p, vh, preferred_element_type=jnp.float32))  # (16,8)
        z = jnp.concatenate(z_heads, axis=-1)                                   # (16,32)

        # ---- single dense output projection (no per-head matmul / head-sum) ----
        attn_out = jnp.dot(z, w_o, preferred_element_type=jnp.float32) + b_o    # (16,32)

        # ---- residual 1: LN(attn(x)) + x (module ordering) ----
        x1 = _layernorm(attn_out, ln1w, ln1b) + x

        # ---- MLP (dropout = identity / eval) ----
        h1 = _gelu(jnp.dot(x1, w_1, preferred_element_type=jnp.float32) + b_1)  # (16,128)
        h2 = jnp.dot(h1, w_2, preferred_element_type=jnp.float32) + b_2         # (16,32)

        # ---- residual 2: LN(mlp(x1)) + x1 ----
        x = _layernorm(h2, ln2w, ln2b) + x1

    # ---- final post_norm + unembed (pre-transposed, vocab padded to 128) ----
    vp = vec_ref[NUM_LAYERS]                                   # (8, 128)
    post_w = vp[0:1, :HIDDEN]
    post_b = vp[1:2, :HIDDEN]
    normed = _layernorm(x, post_w, post_b)
    out_ref[...] = jnp.dot(normed, embT_ref[...],
                           preferred_element_type=jnp.float32)  # (16, 128) lane-dense


@jax.jit
def decoder_only_transformer(tokens, packed):
    B, S = tokens.shape
    ids = tokens.reshape(B * S, 1).astype(jnp.int32)
    vmem = pltpu.MemorySpace.VMEM
    logits_pad = pl.pallas_call(
        fused_transformer_kernel,
        out_shape=jax.ShapeDtypeStruct((B * S, VOCAB_PAD), jnp.float32),
        # No grid: single invocation, every operand fully resident in VMEM.
        in_specs=[pl.BlockSpec(memory_space=vmem) for _ in range(6)],
        out_specs=pl.BlockSpec(memory_space=vmem),
    )(ids, packed["tab"], packed["wA"], packed["w2"], packed["vec"], packed["embT"])
    return logits_pad[:, :VOCAB_SIZE].reshape(B, S, VOCAB_SIZE)


# ------------------------------ parameter packing -----------------------------
def _pad_row(v, n=VEC_W):
    return jnp.concatenate([v, jnp.zeros((n - v.shape[0],), v.dtype)])


def pack_params(raw_layers, emb_w, pos_enc, post_w, post_b):
    """Repack torch-layout weights into the kernel's few, dense operands."""
    wA, w2, vec = [], [], []
    for raw in raw_layers:
        wqkv_t = raw["wqkv"].T                                  # (H, 3H): [Q|K|V] cols
        wqkv_t = wqkv_t.at[:, :HIDDEN].multiply(ATTN_SCALE)     # fold 1/sqrt(hd) into W_Q
        bqkv = raw["bqkv"].at[:HIDDEN].multiply(ATTN_SCALE)     # ... and into b_Q
        wA.append(jnp.concatenate([wqkv_t, raw["wo"].T, raw["w1"].T], axis=1))  # (32,256)
        w2.append(raw["w2"].T)                                                   # (128,32)
        vec.append(jnp.stack([
            _pad_row(bqkv), _pad_row(raw["bo"]),
            _pad_row(raw["ln1w"]), _pad_row(raw["ln1b"]),
            _pad_row(raw["b1"]), _pad_row(raw["b2"]),
            _pad_row(raw["ln2w"]), _pad_row(raw["ln2b"]),
        ]))                                                                      # (8,128)
    post_rows = jnp.zeros((8, VEC_W), jnp.float32)
    post_rows = post_rows.at[0, :HIDDEN].set(post_w).at[1, :HIDDEN].set(post_b)
    vec.append(post_rows)

    # 32-wide table: embedding rows, batch-tiled positional encoding, and the
    # additive causal + same-sequence mask bias over the merged row axis.
    pos_tiled = jnp.tile(pos_enc[:SEQ], (BATCH, 1))                              # (16,32)
    r = np.arange(ROWS)[:, None]
    c = np.arange(ROWS)[None, :]
    allowed = (r // SEQ == c // SEQ) & (r % SEQ >= c % SEQ)
    mask_bias = np.where(allowed, 0.0, NEG_INF).astype(np.float32)               # (16,16)
    mask_pad = np.zeros((ROWS, HIDDEN), np.float32)
    mask_pad[:, :ROWS] = mask_bias
    tab = jnp.concatenate([emb_w, pos_tiled, jnp.asarray(mask_pad)], axis=0)     # (96,32)

    embT = jnp.zeros((HIDDEN, VOCAB_PAD), jnp.float32).at[:, :VOCAB_SIZE].set(emb_w.T)

    return {"tab": tab, "wA": jnp.stack(wA), "w2": jnp.stack(w2),
            "vec": jnp.stack(vec), "embT": embT}


def init_params(key):
    keys = jax.random.split(key, 1 + NUM_LAYERS)

    # Embedding: uniform(-1, 1) as in the module.
    emb_w = jax.random.uniform(keys[0], (VOCAB_SIZE, HIDDEN), jnp.float32,
                               minval=-1.0, maxval=1.0)

    # Sin/cos positional encoding buffer.
    freqs = np.outer(np.arange(MAX_SEQ_LEN),
                     1.0 / 10000 ** (2 * np.arange(HIDDEN // 2) / HIDDEN))
    enc = np.zeros((MAX_SEQ_LEN, HIDDEN), dtype=np.float32)
    enc[:, ::2] = np.sin(freqs)
    enc[:, 1::2] = np.cos(freqs)
    pos_enc = jnp.asarray(enc)

    post_w = jnp.ones((HIDDEN,), jnp.float32)
    post_b = jnp.zeros((HIDDEN,), jnp.float32)

    scale = 0.02
    raw_layers = []
    for l in range(NUM_LAYERS):
        lk = jax.random.split(keys[1 + l], 8)
        raw_layers.append({
            "wqkv": scale * jax.random.normal(lk[0], (3 * HIDDEN, HIDDEN), jnp.float32),
            "bqkv": scale * jax.random.normal(lk[1], (3 * HIDDEN,), jnp.float32),
            "wo":   scale * jax.random.normal(lk[2], (HIDDEN, HIDDEN), jnp.float32),
            "bo":   scale * jax.random.normal(lk[3], (HIDDEN,), jnp.float32),
            "ln1w": jnp.ones((HIDDEN,), jnp.float32),
            "ln1b": jnp.zeros((HIDDEN,), jnp.float32),
            "w1":   scale * jax.random.normal(lk[4], (4 * HIDDEN, HIDDEN), jnp.float32),
            "b1":   scale * jax.random.normal(lk[5], (4 * HIDDEN,), jnp.float32),
            "w2":   scale * jax.random.normal(lk[6], (HIDDEN, 4 * HIDDEN), jnp.float32),
            "b2":   scale * jax.random.normal(lk[7], (HIDDEN,), jnp.float32),
            "ln2w": jnp.ones((HIDDEN,), jnp.float32),
            "ln2b": jnp.zeros((HIDDEN,), jnp.float32),
        })

    packed = pack_params(raw_layers, emb_w, pos_enc, post_w, post_b)
    return {"emb_w": emb_w, "pos_enc": pos_enc, "post_w": post_w, "post_b": post_b,
            "layers_raw": raw_layers, "packed": packed}


# ------------------------ pure-JAX reference (module math) --------------------
def reference_forward(tokens, params):
    with jax.default_matmul_precision("float32"):
        B, S = tokens.shape
        x = params["emb_w"][tokens] + params["pos_enc"][:S, :]
        x = x.astype(jnp.float32)
        mask = jnp.tril(jnp.ones((S, S), dtype=bool))
        for raw in params["layers_raw"]:
            qkv = x @ raw["wqkv"].T + raw["bqkv"]
            q, k, v = jnp.split(qkv, 3, axis=-1)
            q = q.reshape(B, S, NUM_HEADS, HEAD_DIM)
            k = k.reshape(B, S, NUM_HEADS, HEAD_DIM)
            v = v.reshape(B, S, NUM_HEADS, HEAD_DIM)
            s = jnp.einsum('bqhd,bkhd->bhqk', q, k) * ATTN_SCALE
            s = jnp.where(mask[None, None, :, :], s, NEG_INF)
            p = _softmax_ref(s)
            z = jnp.einsum('bhqk,bkhd->bqhd', p, v).reshape(B, S, HIDDEN)
            attn = z @ raw["wo"].T + raw["bo"]
            x1 = _layernorm(attn, raw["ln1w"], raw["ln1b"]) + x
            h1 = _gelu(x1 @ raw["w1"].T + raw["b1"])
            h2 = h1 @ raw["w2"].T + raw["b2"]
            x = _layernorm(h2, raw["ln2w"], raw["ln2b"]) + x1
        out = _layernorm(x, params["post_w"], params["post_b"])
        return jnp.einsum('bse,ve->bsv', out, params["emb_w"])


# ----------------------------------- main --------------------------------------
if __name__ == "__main__":
    key = jax.random.PRNGKey(0)
    pkey, tkey = jax.random.split(key)
    params = init_params(pkey)
    tokens = jax.random.randint(tkey, (BATCH, SEQ), 0, VOCAB_SIZE, dtype=jnp.int32)

    logits = decoder_only_transformer(tokens, params["packed"])
    jax.block_until_ready(logits)

    assert logits.shape == (BATCH, SEQ, VOCAB_SIZE)
    assert logits.dtype == jnp.float32
    assert bool(jnp.all(jnp.isfinite(logits)))

    # Correctness check against a full-f32-precision pure-JAX reference.
    # Tolerance tightened vs the previous 1e-1: sized to absorb MXU
    # default-precision f32 decomposition and the approx-EUP reciprocal in the
    # softmax, while still catching packing / head-ordering bugs (O(0.1+)).
    ref = reference_forward(tokens, params)
    diff = float(jnp.max(jnp.abs(logits - ref)))
    np.testing.assert_allclose(np.asarray(logits), np.asarray(ref),
                               rtol=2e-2, atol=3e-2)

    print("KERNEL_OK")
</pallas_src>

<mosaic_0001>
module attributes {stable_mosaic.version = 11 : i64} {
  func.func @fused_transformer_kernel(%arg0: memref<16x1xi32, #tpu.memory_space<vmem>>, %arg1: memref<96x32xf32, #tpu.memory_space<vmem>>, %arg2: memref<2x32x256xf32, #tpu.memory_space<vmem>>, %arg3: memref<2x128x32xf32, #tpu.memory_space<vmem>>, %arg4: memref<3x8x128xf32, #tpu.memory_space<vmem>>, %arg5: memref<32x128xf32, #tpu.memory_space<vmem>>, %arg6: memref<16x128xf32, #tpu.memory_space<vmem>>) attributes {dimension_semantics = [], scalar_prefetch = 0 : i64, scratch_operands = 0 : i64, tpu.core_type = #tpu.core_type<tc>} {
    %c0 = arith.constant 0 : index
    %c0_0 = arith.constant 0 : index
    %0 = vector.load %arg1[%c0, %c0_0] : memref<96x32xf32, #tpu.memory_space<vmem>>, vector<96x32xf32>
    %1 = vector.extract_strided_slice %0 {offsets = [0, 0], sizes = [64, 32], strides = [1, 1]} : vector<96x32xf32> to vector<64x32xf32>
    %2 = vector.extract_strided_slice %0 {offsets = [64, 0], sizes = [16, 32], strides = [1, 1]} : vector<96x32xf32> to vector<16x32xf32>
    %3 = vector.extract_strided_slice %0 {offsets = [80, 0], sizes = [16, 16], strides = [1, 1]} : vector<96x32xf32> to vector<16x16xf32>
    %c0_1 = arith.constant 0 : index
    %c0_2 = arith.constant 0 : index
    %4 = vector.load %arg0[%c0_1, %c0_2] : memref<16x1xi32, #tpu.memory_space<vmem>>, vector<16x1xi32>
    %5 = tpu.iota {dimensions = array<i32: 1>} : vector<16x64xi32>
    %6 = vector.broadcast %4 : vector<16x1xi32> to vector<16x64xi32>
    %7 = arith.cmpi eq, %6, %5 : vector<16x64xi32>
    %8 = arith.extui %7 : vector<16x64xi1> to vector<16x64xi32>
    %9 = arith.sitofp %8 : vector<16x64xi32> to vector<16x64xf32>
    %cst = arith.constant dense<0.000000e+00> : vector<16x32xf32>
    %10 = tpu.matmul %9, %1, %cst {dimension_numbers = #tpu.dot_dimension_numbers<[1], [0], [0], [1], [0, 0, 1, 1], [], []>} : vector<16x64xf32>, vector<64x32xf32>, vector<16x32xf32> -> vector<16x32xf32>
    %11 = arith.addf %10, %2 : vector<16x32xf32>
    %c0_3 = arith.constant 0 : index
    %c0_4 = arith.constant 0 : index
    %c0_5 = arith.constant 0 : index
    %12 = vector.load %arg2[%c0_3, %c0_4, %c0_5] : memref<2x32x256xf32, #tpu.memory_space<vmem>>, vector<1x32x256xf32>
    %13 = vector.shape_cast %12 : vector<1x32x256xf32> to vector<32x256xf32>
    %c0_6 = arith.constant 0 : index
    %c0_7 = arith.constant 0 : index
    %c0_8 = arith.constant 0 : index
    %14 = vector.load %arg4[%c0_6, %c0_7, %c0_8] : memref<3x8x128xf32, #tpu.memory_space<vmem>>, vector<1x8x128xf32>
    %15 = vector.shape_cast %14 : vector<1x8x128xf32> to vector<8x128xf32>
    %16 = vector.extract_strided_slice %13 {offsets = [0, 0], sizes = [32, 96], strides = [1, 1]} : vector<32x256xf32> to vector<32x96xf32>
    %17 = vector.extract_strided_slice %13 {offsets = [0, 96], sizes = [32, 32], strides = [1, 1]} : vector<32x256xf32> to vector<32x32xf32>
    %18 = vector.extract_strided_slice %13 {offsets = [0, 128], sizes = [32, 128], strides = [1, 1]} : vector<32x256xf32> to vector<32x128xf32>
    %c0_9 = arith.constant 0 : index
    %c0_10 = arith.constant 0 : index
    %c0_11 = arith.constant 0 : index
    %19 = vector.load %arg3[%c0_9, %c0_10, %c0_11] : memref<2x128x32xf32, #tpu.memory_space<vmem>>, vector<1x128x32xf32>
    %20 = vector.shape_cast %19 : vector<1x128x32xf32> to vector<128x32xf32>
    %21 = vector.extract_strided_slice %15 {offsets = [0, 0], sizes = [1, 96], strides = [1, 1]} : vector<8x128xf32> to vector<1x96xf32>
    %22 = vector.extract_strided_slice %15 {offsets = [1, 0], sizes = [1, 32], strides = [1, 1]} : vector<8x128xf32> to vector<1x32xf32>
    %23 = vector.extract_strided_slice %15 {offsets = [2, 0], sizes = [1, 32], strides = [1, 1]} : vector<8x128xf32> to vector<1x32xf32>
    %24 = vector.extract_strided_slice %15 {offsets = [3, 0], sizes = [1, 32], strides = [1, 1]} : vector<8x128xf32> to vector<1x32xf32>
    %25 = vector.extract_strided_slice %15 {offsets = [4, 0], sizes = [1, 128], strides = [1, 1]} : vector<8x128xf32> to vector<1x128xf32>
    %26 = vector.extract_strided_slice %15 {offsets = [5, 0], sizes = [1, 32], strides = [1, 1]} : vector<8x128xf32> to vector<1x32xf32>
    %27 = vector.extract_strided_slice %15 {offsets = [6, 0], sizes = [1, 32], strides = [1, 1]} : vector<8x128xf32> to vector<1x32xf32>
    %28 = vector.extract_strided_slice %15 {offsets = [7, 0], sizes = [1, 32], strides = [1, 1]} : vector<8x128xf32> to vector<1x32xf32>
    %cst_12 = arith.constant dense<0.000000e+00> : vector<16x96xf32>
    %29 = tpu.matmul %11, %16, %cst_12 {dimension_numbers = #tpu.dot_dimension_numbers<[1], [0], [0], [1], [0, 0, 1, 1], [], []>} : vector<16x32xf32>, vector<32x96xf32>, vector<16x96xf32> -> vector<16x96xf32>
    %30 = vector.broadcast %21 : vector<1x96xf32> to vector<16x96xf32>
    %31 = arith.addf %29, %30 : vector<16x96xf32>
    %32 = vector.extract_strided_slice %31 {offsets = [0, 0], sizes = [16, 8], strides = [1, 1]} : vector<16x96xf32> to vector<16x8xf32>
    %33 = vector.extract_strided_slice %31 {offsets = [0, 32], sizes = [16, 8], strides = [1, 1]} : vector<16x96xf32> to vector<16x8xf32>
    %34 = vector.extract_strided_slice %31 {offsets = [0, 64], sizes = [16, 8], strides = [1, 1]} : vector<16x96xf32> to vector<16x8xf32>
    %cst_13 = arith.constant dense<0.000000e+00> : vector<16x16xf32>
    %35 = tpu.matmul %32, %33, %cst_13 {dimension_numbers = #tpu.dot_dimension_numbers<[1], [1], [0], [0], [0, 0, 1, 0], [], []>} : vector<16x8xf32>, vector<16x8xf32>, vector<16x16xf32> -> vector<16x16xf32>
    %36 = arith.addf %35, %3 : vector<16x16xf32>
    %cst_14 = arith.constant dense<0xFF800000> : vector<16xf32>
    %37 = vector.multi_reduction <maximumf>, %36, %cst_14 [1] : vector<16x16xf32> to vector<16xf32>
    %38 = vector.shape_cast %37 : vector<16xf32> to vector<16x1xf32>
    %39 = vector.broadcast %38 : vector<16x1xf32> to vector<16x16xf32>
    %40 = arith.subf %36, %39 : vector<16x16xf32>
    %41 = math.exp %40 : vector<16x16xf32>
    %cst_15 = arith.constant dense<0.000000e+00> : vector<16xf32>
    %42 = vector.multi_reduction <add>, %41, %cst_15 [1] : vector<16x16xf32> to vector<16xf32>
    %43 = vector.shape_cast %42 : vector<16xf32> to vector<16x1xf32>
    %44 = tpu.reciprocal %43 {approx = true} : vector<16x1xf32> -> vector<16x1xf32>
    %45 = vector.broadcast %44 : vector<16x1xf32> to vector<16x16xf32>
    %46 = arith.mulf %41, %45 : vector<16x16xf32>
    %cst_16 = arith.constant dense<0.000000e+00> : vector<16x8xf32>
    %47 = tpu.matmul %46, %34, %cst_16 {dimension_numbers = #tpu.dot_dimension_numbers<[1], [0], [0], [1], [0, 0, 1, 1], [], []>} : vector<16x16xf32>, vector<16x8xf32>, vector<16x8xf32> -> vector<16x8xf32>
    %48 = vector.extract_strided_slice %31 {offsets = [0, 8], sizes = [16, 8], strides = [1, 1]} : vector<16x96xf32> to vector<16x8xf32>
    %49 = vector.extract_strided_slice %31 {offsets = [0, 40], sizes = [16, 8], strides = [1, 1]} : vector<16x96xf32> to vector<16x8xf32>
    %50 = vector.extract_strided_slice %31 {offsets = [0, 72], sizes = [16, 8], strides = [1, 1]} : vector<16x96xf32> to vector<16x8xf32>
    %cst_17 = arith.constant dense<0.000000e+00> : vector<16x16xf32>
    %51 = tpu.matmul %48, %49, %cst_17 {dimension_numbers = #tpu.dot_dimension_numbers<[1], [1], [0], [0], [0, 0, 1, 0], [], []>} : vector<16x8xf32>, vector<16x8xf32>, vector<16x16xf32> -> vector<16x16xf32>
    %52 = arith.addf %51, %3 : vector<16x16xf32>
    %cst_18 = arith.constant dense<0xFF800000> : vector<16xf32>
    %53 = vector.multi_reduction <maximumf>, %52, %cst_18 [1] : vector<16x16xf32> to vector<16xf32>
    %54 = vector.shape_cast %53 : vector<16xf32> to vector<16x1xf32>
    %55 = vector.broadcast %54 : vector<16x1xf32> to vector<16x16xf32>
    %56 = arith.subf %52, %55 : vector<16x16xf32>
    %57 = math.exp %56 : vector<16x16xf32>
    %cst_19 = arith.constant dense<0.000000e+00> : vector<16xf32>
    %58 = vector.multi_reduction <add>, %57, %cst_19 [1] : vector<16x16xf32> to vector<16xf32>
    %59 = vector.shape_cast %58 : vector<16xf32> to vector<16x1xf32>
    %60 = tpu.reciprocal %59 {approx = true} : vector<16x1xf32> -> vector<16x1xf32>
    %61 = vector.broadcast %60 : vector<16x1xf32> to vector<16x16xf32>
    %62 = arith.mulf %57, %61 : vector<16x16xf32>
    %cst_20 = arith.constant dense<0.000000e+00> : vector<16x8xf32>
    %63 = tpu.matmul %62, %50, %cst_20 {dimension_numbers = #tpu.dot_dimension_numbers<[1], [0], [0], [1], [0, 0, 1, 1], [], []>} : vector<16x16xf32>, vector<16x8xf32>, vector<16x8xf32> -> vector<16x8xf32>
    %64 = vector.extract_strided_slice %31 {offsets = [0, 16], sizes = [16, 8], strides = [1, 1]} : vector<16x96xf32> to vector<16x8xf32>
    %65 = vector.extract_strided_slice %31 {offsets = [0, 48], sizes = [16, 8], strides = [1, 1]} : vector<16x96xf32> to vector<16x8xf32>
    %66 = vector.extract_strided_slice %31 {offsets = [0, 80], sizes = [16, 8], strides = [1, 1]} : vector<16x96xf32> to vector<16x8xf32>
    %cst_21 = arith.constant dense<0.000000e+00> : vector<16x16xf32>
    %67 = tpu.matmul %64, %65, %cst_21 {dimension_numbers = #tpu.dot_dimension_numbers<[1], [1], [0], [0], [0, 0, 1, 0], [], []>} : vector<16x8xf32>, vector<16x8xf32>, vector<16x16xf32> -> vector<16x16xf32>
    %68 = arith.addf %67, %3 : vector<16x16xf32>
    %cst_22 = arith.constant dense<0xFF800000> : vector<16xf32>
    %69 = vector.multi_reduction <maximumf>, %68, %cst_22 [1] : vector<16x16xf32> to vector<16xf32>
    %70 = vector.shape_cast %69 : vector<16xf32> to vector<16x1xf32>
    %71 = vector.broadcast %70 : vector<16x1xf32> to vector<16x16xf32>
    %72 = arith.subf %68, %71 : vector<16x16xf32>
    %73 = math.exp %72 : vector<16x16xf32>
    %cst_23 = arith.constant dense<0.000000e+00> : vector<16xf32>
    %74 = vector.multi_reduction <add>, %73, %cst_23 [1] : vector<16x16xf32> to vector<16xf32>
    %75 = vector.shape_cast %74 : vector<16xf32> to vector<16x1xf32>
    %76 = tpu.reciprocal %75 {approx = true} : vector<16x1xf32> -> vector<16x1xf32>
    %77 = vector.broadcast %76 : vector<16x1xf32> to vector<16x16xf32>
    %78 = arith.mulf %73, %77 : vector<16x16xf32>
    %cst_24 = arith.constant dense<0.000000e+00> : vector<16x8xf32>
    %79 = tpu.matmul %78, %66, %cst_24 {dimension_numbers = #tpu.dot_dimension_numbers<[1], [0], [0], [1], [0, 0, 1, 1], [], []>} : vector<16x16xf32>, vector<16x8xf32>, vector<16x8xf32> -> vector<16x8xf32>
    %80 = vector.extract_strided_slice %31 {offsets = [0, 24], sizes = [16, 8], strides = [1, 1]} : vector<16x96xf32> to vector<16x8xf32>
    %81 = vector.extract_strided_slice %31 {offsets = [0, 56], sizes = [16, 8], strides = [1, 1]} : vector<16x96xf32> to vector<16x8xf32>
    %82 = vector.extract_strided_slice %31 {offsets = [0, 88], sizes = [16, 8], strides = [1, 1]} : vector<16x96xf32> to vector<16x8xf32>
    %cst_25 = arith.constant dense<0.000000e+00> : vector<16x16xf32>
    %83 = tpu.matmul %80, %81, %cst_25 {dimension_numbers = #tpu.dot_dimension_numbers<[1], [1], [0], [0], [0, 0, 1, 0], [], []>} : vector<16x8xf32>, vector<16x8xf32>, vector<16x16xf32> -> vector<16x16xf32>
    %84 = arith.addf %83, %3 : vector<16x16xf32>
    %cst_26 = arith.constant dense<0xFF800000> : vector<16xf32>
    %85 = vector.multi_reduction <maximumf>, %84, %cst_26 [1] : vector<16x16xf32> to vector<16xf32>
    %86 = vector.shape_cast %85 : vector<16xf32> to vector<16x1xf32>
    %87 = vector.broadcast %86 : vector<16x1xf32> to vector<16x16xf32>
    %88 = arith.subf %84, %87 : vector<16x16xf32>
    %89 = math.exp %88 : vector<16x16xf32>
    %cst_27 = arith.constant dense<0.000000e+00> : vector<16xf32>
    %90 = vector.multi_reduction <add>, %89, %cst_27 [1] : vector<16x16xf32> to vector<16xf32>
    %91 = vector.shape_cast %90 : vector<16xf32> to vector<16x1xf32>
    %92 = tpu.reciprocal %91 {approx = true} : vector<16x1xf32> -> vector<16x1xf32>
    %93 = vector.broadcast %92 : vector<16x1xf32> to vector<16x16xf32>
    %94 = arith.mulf %89, %93 : vector<16x16xf32>
    %cst_28 = arith.constant dense<0.000000e+00> : vector<16x8xf32>
    %95 = tpu.matmul %94, %82, %cst_28 {dimension_numbers = #tpu.dot_dimension_numbers<[1], [0], [0], [1], [0, 0, 1, 1], [], []>} : vector<16x16xf32>, vector<16x8xf32>, vector<16x8xf32> -> vector<16x8xf32>
    %96 = tpu.concatenate %47, %63, %79, %95 in 1 : vector<16x8xf32>, vector<16x8xf32>, vector<16x8xf32>, vector<16x8xf32> -> vector<16x32xf32>
    %cst_29 = arith.constant dense<0.000000e+00> : vector<16x32xf32>
    %97 = tpu.matmul %96, %17, %cst_29 {dimension_numbers = #tpu.dot_dimension_numbers<[1], [0], [0], [1], [0, 0, 1, 1], [], []>} : vector<16x32xf32>, vector<32x32xf32>, vector<16x32xf32> -> vector<16x32xf32>
    %98 = vector.broadcast %22 : vector<1x32xf32> to vector<16x32xf32>
    %99 = arith.addf %97, %98 : vector<16x32xf32>
    %cst_30 = arith.constant dense<0.000000e+00> : vector<16xf32>
    %100 = vector.multi_reduction <add>, %99, %cst_30 [1] : vector<16x32xf32> to vector<16xf32>
    %101 = vector.shape_cast %100 : vector<16xf32> to vector<16x1xf32>
    %cst_31 = arith.constant 3.200000e+01 : f32
    %102 = vector.broadcast %cst_31 : f32 to vector<16x1xf32>
    %103 = arith.divf %101, %102 : vector<16x1xf32>
    %104 = vector.broadcast %103 : vector<16x1xf32> to vector<16x32xf32>
    %105 = arith.subf %99, %104 : vector<16x32xf32>
    %106 = arith.mulf %105, %105 : vector<16x32xf32>
    %cst_32 = arith.constant dense<0.000000e+00> : vector<16xf32>
    %107 = vector.multi_reduction <add>, %106, %cst_32 [1] : vector<16x32xf32> to vector<16xf32>
    %108 = vector.shape_cast %107 : vector<16xf32> to vector<16x1xf32>
    %cst_33 = arith.constant 3.200000e+01 : f32
    %109 = vector.broadcast %cst_33 : f32 to vector<16x1xf32>
    %110 = arith.divf %108, %109 : vector<16x1xf32>
    %111 = vector.broadcast %103 : vector<16x1xf32> to vector<16x32xf32>
    %112 = arith.subf %99, %111 : vector<16x32xf32>
    %cst_34 = arith.constant 9.99999974E-6 : f32
    %113 = vector.broadcast %cst_34 : f32 to vector<16x1xf32>
    %114 = arith.addf %110, %113 : vector<16x1xf32>
    %115 = math.rsqrt %114 : vector<16x1xf32>
    %116 = vector.broadcast %115 : vector<16x1xf32> to vector<16x32xf32>
    %117 = arith.mulf %112, %116 : vector<16x32xf32>
    %118 = vector.broadcast %23 : vector<1x32xf32> to vector<16x32xf32>
    %119 = arith.mulf %117, %118 : vector<16x32xf32>
    %120 = vector.broadcast %24 : vector<1x32xf32> to vector<16x32xf32>
    %121 = arith.addf %119, %120 : vector<16x32xf32>
    %122 = arith.addf %121, %11 : vector<16x32xf32>
    %cst_35 = arith.constant dense<0.000000e+00> : vector<16x128xf32>
    %123 = tpu.matmul %122, %18, %cst_35 {dimension_numbers = #tpu.dot_dimension_numbers<[1], [0], [0], [1], [0, 0, 1, 1], [], []>} : vector<16x32xf32>, vector<32x128xf32>, vector<16x128xf32> -> vector<16x128xf32>
    %124 = vector.broadcast %25 : vector<1x128xf32> to vector<16x128xf32>
    %125 = arith.addf %123, %124 : vector<16x128xf32>
    %cst_36 = arith.constant 5.000000e-01 : f32
    %126 = vector.broadcast %cst_36 : f32 to vector<16x128xf32>
    %127 = arith.mulf %125, %126 : vector<16x128xf32>
    %cst_37 = arith.constant 4.471500e-02 : f32
    %128 = vector.broadcast %cst_37 : f32 to vector<16x128xf32>
    %129 = arith.mulf %128, %125 : vector<16x128xf32>
    %130 = arith.mulf %129, %125 : vector<16x128xf32>
    %131 = arith.mulf %130, %125 : vector<16x128xf32>
    %132 = arith.addf %125, %131 : vector<16x128xf32>
    %cst_38 = arith.constant 0.797884583 : f32
    %133 = vector.broadcast %cst_38 : f32 to vector<16x128xf32>
    %134 = arith.mulf %133, %132 : vector<16x128xf32>
    %135 = math.tanh %134 : vector<16x128xf32>
    %cst_39 = arith.constant 1.000000e+00 : f32
    %136 = vector.broadcast %cst_39 : f32 to vector<16x128xf32>
    %137 = arith.addf %136, %135 : vector<16x128xf32>
    %138 = arith.mulf %127, %137 : vector<16x128xf32>
    %cst_40 = arith.constant dense<0.000000e+00> : vector<16x32xf32>
    %139 = tpu.matmul %138, %20, %cst_40 {dimension_numbers = #tpu.dot_dimension_numbers<[1], [0], [0], [1], [0, 0, 1, 1], [], []>} : vector<16x128xf32>, vector<128x32xf32>, vector<16x32xf32> -> vector<16x32xf32>
    %140 = vector.broadcast %26 : vector<1x32xf32> to vector<16x32xf32>
    %141 = arith.addf %139, %140 : vector<16x32xf32>
    %cst_41 = arith.constant dense<0.000000e+00> : vector<16xf32>
    %142 = vector.multi_reduction <add>, %141, %cst_41 [1] : vector<16x32xf32> to vector<16xf32>
    %143 = vector.shape_cast %142 : vector<16xf32> to vector<16x1xf32>
    %cst_42 = arith.constant 3.200000e+01 : f32
    %144 = vector.broadcast %cst_42 : f32 to vector<16x1xf32>
    %145 = arith.divf %143, %144 : vector<16x1xf32>
    %146 = vector.broadcast %145 : vector<16x1xf32> to vector<16x32xf32>
    %147 = arith.subf %141, %146 : vector<16x32xf32>
    %148 = arith.mulf %147, %147 : vector<16x32xf32>
    %cst_43 = arith.constant dense<0.000000e+00> : vector<16xf32>
    %149 = vector.multi_reduction <add>, %148, %cst_43 [1] : vector<16x32xf32> to vector<16xf32>
    %150 = vector.shape_cast %149 : vector<16xf32> to vector<16x1xf32>
    %cst_44 = arith.constant 3.200000e+01 : f32
    %151 = vector.broadcast %cst_44 : f32 to vector<16x1xf32>
    %152 = arith.divf %150, %151 : vector<16x1xf32>
    %153 = vector.broadcast %145 : vector<16x1xf32> to vector<16x32xf32>
    %154 = arith.subf %141, %153 : vector<16x32xf32>
    %cst_45 = arith.constant 9.99999974E-6 : f32
    %155 = vector.broadcast %cst_45 : f32 to vector<16x1xf32>
    %156 = arith.addf %152, %155 : vector<16x1xf32>
    %157 = math.rsqrt %156 : vector<16x1xf32>
    %158 = vector.broadcast %157 : vector<16x1xf32> to vector<16x32xf32>
    %159 = arith.mulf %154, %158 : vector<16x32xf32>
    %160 = vector.broadcast %27 : vector<1x32xf32> to vector<16x32xf32>
    %161 = arith.mulf %159, %160 : vector<16x32xf32>
    %162 = vector.broadcast %28 : vector<1x32xf32> to vector<16x32xf32>
    %163 = arith.addf %161, %162 : vector<16x32xf32>
    %164 = arith.addf %163, %122 : vector<16x32xf32>
    %c1 = arith.constant 1 : index
    %c0_46 = arith.constant 0 : index
    %c0_47 = arith.constant 0 : index
    %165 = vector.load %arg2[%c1, %c0_46, %c0_47] : memref<2x32x256xf32, #tpu.memory_space<vmem>>, vector<1x32x256xf32>
    %166 = vector.shape_cast %165 : vector<1x32x256xf32> to vector<32x256xf32>
    %c1_48 = arith.constant 1 : index
    %c0_49 = arith.constant 0 : index
    %c0_50 = arith.constant 0 : index
    %167 = vector.load %arg4[%c1_48, %c0_49, %c0_50] : memref<3x8x128xf32, #tpu.memory_space<vmem>>, vector<1x8x128xf32>
    %168 = vector.shape_cast %167 : vector<1x8x128xf32> to vector<8x128xf32>
    %169 = vector.extract_strided_slice %166 {offsets = [0, 0], sizes = [32, 96], strides = [1, 1]} : vector<32x256xf32> to vector<32x96xf32>
    %170 = vector.extract_strided_slice %166 {offsets = [0, 96], sizes = [32, 32], strides = [1, 1]} : vector<32x256xf32> to vector<32x32xf32>
    %171 = vector.extract_strided_slice %166 {offsets = [0, 128], sizes = [32, 128], strides = [1, 1]} : vector<32x256xf32> to vector<32x128xf32>
    %c1_51 = arith.constant 1 : index
    %c0_52 = arith.constant 0 : index
    %c0_53 = arith.constant 0 : index
    %172 = vector.load %arg3[%c1_51, %c0_52, %c0_53] : memref<2x128x32xf32, #tpu.memory_space<vmem>>, vector<1x128x32xf32>
    %173 = vector.shape_cast %172 : vector<1x128x32xf32> to vector<128x32xf32>
    %174 = vector.extract_strided_slice %168 {offsets = [0, 0], sizes = [1, 96], strides = [1, 1]} : vector<8x128xf32> to vector<1x96xf32>
    %175 = vector.extract_strided_slice %168 {offsets = [1, 0], sizes = [1, 32], strides = [1, 1]} : vector<8x128xf32> to vector<1x32xf32>
    %176 = vector.extract_strided_slice %168 {offsets = [2, 0], sizes = [1, 32], strides = [1, 1]} : vector<8x128xf32> to vector<1x32xf32>
    %177 = vector.extract_strided_slice %168 {offsets = [3, 0], sizes = [1, 32], strides = [1, 1]} : vector<8x128xf32> to vector<1x32xf32>
    %178 = vector.extract_strided_slice %168 {offsets = [4, 0], sizes = [1, 128], strides = [1, 1]} : vector<8x128xf32> to vector<1x128xf32>
    %179 = vector.extract_strided_slice %168 {offsets = [5, 0], sizes = [1, 32], strides = [1, 1]} : vector<8x128xf32> to vector<1x32xf32>
    %180 = vector.extract_strided_slice %168 {offsets = [6, 0], sizes = [1, 32], strides = [1, 1]} : vector<8x128xf32> to vector<1x32xf32>
    %181 = vector.extract_strided_slice %168 {offsets = [7, 0], sizes = [1, 32], strides = [1, 1]} : vector<8x128xf32> to vector<1x32xf32>
    %cst_54 = arith.constant dense<0.000000e+00> : vector<16x96xf32>
    %182 = tpu.matmul %164, %169, %cst_54 {dimension_numbers = #tpu.dot_dimension_numbers<[1], [0], [0], [1], [0, 0, 1, 1], [], []>} : vector<16x32xf32>, vector<32x96xf32>, vector<16x96xf32> -> vector<16x96xf32>
    %183 = vector.broadcast %174 : vector<1x96xf32> to vector<16x96xf32>
    %184 = arith.addf %182, %183 : vector<16x96xf32>
    %185 = vector.extract_strided_slice %184 {offsets = [0, 0], sizes = [16, 8], strides = [1, 1]} : vector<16x96xf32> to vector<16x8xf32>
    %186 = vector.extract_strided_slice %184 {offsets = [0, 32], sizes = [16, 8], strides = [1, 1]} : vector<16x96xf32> to vector<16x8xf32>
    %187 = vector.extract_strided_slice %184 {offsets = [0, 64], sizes = [16, 8], strides = [1, 1]} : vector<16x96xf32> to vector<16x8xf32>
    %cst_55 = arith.constant dense<0.000000e+00> : vector<16x16xf32>
    %188 = tpu.matmul %185, %186, %cst_55 {dimension_numbers = #tpu.dot_dimension_numbers<[1], [1], [0], [0], [0, 0, 1, 0], [], []>} : vector<16x8xf32>, vector<16x8xf32>, vector<16x16xf32> -> vector<16x16xf32>
    %189 = arith.addf %188, %3 : vector<16x16xf32>
    %cst_56 = arith.constant dense<0xFF800000> : vector<16xf32>
    %190 = vector.multi_reduction <maximumf>, %189, %cst_56 [1] : vector<16x16xf32> to vector<16xf32>
    %191 = vector.shape_cast %190 : vector<16xf32> to vector<16x1xf32>
    %192 = vector.broadcast %191 : vector<16x1xf32> to vector<16x16xf32>
    %193 = arith.subf %189, %192 : vector<16x16xf32>
    %194 = math.exp %193 : vector<16x16xf32>
    %cst_57 = arith.constant dense<0.000000e+00> : vector<16xf32>
    %195 = vector.multi_reduction <add>, %194, %cst_57 [1] : vector<16x16xf32> to vector<16xf32>
    %196 = vector.shape_cast %195 : vector<16xf32> to vector<16x1xf32>
    %197 = tpu.reciprocal %196 {approx = true} : vector<16x1xf32> -> vector<16x1xf32>
    %198 = vector.broadcast %197 : vector<16x1xf32> to vector<16x16xf32>
    %199 = arith.mulf %194, %198 : vector<16x16xf32>
    %cst_58 = arith.constant dense<0.000000e+00> : vector<16x8xf32>
    %200 = tpu.matmul %199, %187, %cst_58 {dimension_numbers = #tpu.dot_dimension_numbers<[1], [0], [0], [1], [0, 0, 1, 1], [], []>} : vector<16x16xf32>, vector<16x8xf32>, vector<16x8xf32> -> vector<16x8xf32>
    %201 = vector.extract_strided_slice %184 {offsets = [0, 8], sizes = [16, 8], strides = [1, 1]} : vector<16x96xf32> to vector<16x8xf32>
    %202 = vector.extract_strided_slice %184 {offsets = [0, 40], sizes = [16, 8], strides = [1, 1]} : vector<16x96xf32> to vector<16x8xf32>
    %203 = vector.extract_strided_slice %184 {offsets = [0, 72], sizes = [16, 8], strides = [1, 1]} : vector<16x96xf32> to vector<16x8xf32>
    %cst_59 = arith.constant dense<0.000000e+00> : vector<16x16xf32>
    %204 = tpu.matmul %201, %202, %cst_59 {dimension_numbers = #tpu.dot_dimension_numbers<[1], [1], [0], [0], [0, 0, 1, 0], [], []>} : vector<16x8xf32>, vector<16x8xf32>, vector<16x16xf32> -> vector<16x16xf32>
    %205 = arith.addf %204, %3 : vector<16x16xf32>
    %cst_60 = arith.constant dense<0xFF800000> : vector<16xf32>
    %206 = vector.multi_reduction <maximumf>, %205, %cst_60 [1] : vector<16x16xf32> to vector<16xf32>
    %207 = vector.shape_cast %206 : vector<16xf32> to vector<16x1xf32>
    %208 = vector.broadcast %207 : vector<16x1xf32> to vector<16x16xf32>
    %209 = arith.subf %205, %208 : vector<16x16xf32>
    %210 = math.exp %209 : vector<16x16xf32>
    %cst_61 = arith.constant dense<0.000000e+00> : vector<16xf32>
    %211 = vector.multi_reduction <add>, %210, %cst_61 [1] : vector<16x16xf32> to vector<16xf32>
    %212 = vector.shape_cast %211 : vector<16xf32> to vector<16x1xf32>
    %213 = tpu.reciprocal %212 {approx = true} : vector<16x1xf32> -> vector<16x1xf32>
    %214 = vector.broadcast %213 : vector<16x1xf32> to vector<16x16xf32>
    %215 = arith.mulf %210, %214 : vector<16x16xf32>
    %cst_62 = arith.constant dense<0.000000e+00> : vector<16x8xf32>
    %216 = tpu.matmul %215, %203, %cst_62 {dimension_numbers = #tpu.dot_dimension_numbers<[1], [0], [0], [1], [0, 0, 1, 1], [], []>} : vector<16x16xf32>, vector<16x8xf32>, vector<16x8xf32> -> vector<16x8xf32>
    %217 = vector.extract_strided_slice %184 {offsets = [0, 16], sizes = [16, 8], strides = [1, 1]} : vector<16x96xf32> to vector<16x8xf32>
    %218 = vector.extract_strided_slice %184 {offsets = [0, 48], sizes = [16, 8], strides = [1, 1]} : vector<16x96xf32> to vector<16x8xf32>
    %219 = vector.extract_strided_slice %184 {offsets = [0, 80], sizes = [16, 8], strides = [1, 1]} : vector<16x96xf32> to vector<16x8xf32>
    %cst_63 = arith.constant dense<0.000000e+00> : vector<16x16xf32>
    %220 = tpu.matmul %217, %218, %cst_63 {dimension_numbers = #tpu.dot_dimension_numbers<[1], [1], [0], [0], [0, 0, 1, 0], [], []>} : vector<16x8xf32>, vector<16x8xf32>, vector<16x16xf32> -> vector<16x16xf32>
    %221 = arith.addf %220, %3 : vector<16x16xf32>
    %cst_64 = arith.constant dense<0xFF800000> : vector<16xf32>
    %222 = vector.multi_reduction <maximumf>, %221, %cst_64 [1] : vector<16x16xf32> to vector<16xf32>
    %223 = vector.shape_cast %222 : vector<16xf32> to vector<16x1xf32>
    %224 = vector.broadcast %223 : vector<16x1xf32> to vector<16x16xf32>
    %225 = arith.subf %221, %224 : vector<16x16xf32>
    %226 = math.exp %225 : vector<16x16xf32>
    %cst_65 = arith.constant dense<0.000000e+00> : vector<16xf32>
    %227 = vector.multi_reduction <add>, %226, %cst_65 [1] : vector<16x16xf32> to vector<16xf32>
    %228 = vector.shape_cast %227 : vector<16xf32> to vector<16x1xf32>
    %229 = tpu.reciprocal %228 {approx = true} : vector<16x1xf32> -> vector<16x1xf32>
    %230 = vector.broadcast %229 : vector<16x1xf32> to vector<16x16xf32>
    %231 = arith.mulf %226, %230 : vector<16x16xf32>
    %cst_66 = arith.constant dense<0.000000e+00> : vector<16x8xf32>
    %232 = tpu.matmul %231, %219, %cst_66 {dimension_numbers = #tpu.dot_dimension_numbers<[1], [0], [0], [1], [0, 0, 1, 1], [], []>} : vector<16x16xf32>, vector<16x8xf32>, vector<16x8xf32> -> vector<16x8xf32>
    %233 = vector.extract_strided_slice %184 {offsets = [0, 24], sizes = [16, 8], strides = [1, 1]} : vector<16x96xf32> to vector<16x8xf32>
    %234 = vector.extract_strided_slice %184 {offsets = [0, 56], sizes = [16, 8], strides = [1, 1]} : vector<16x96xf32> to vector<16x8xf32>
    %235 = vector.extract_strided_slice %184 {offsets = [0, 88], sizes = [16, 8], strides = [1, 1]} : vector<16x96xf32> to vector<16x8xf32>
    %cst_67 = arith.constant dense<0.000000e+00> : vector<16x16xf32>
    %236 = tpu.matmul %233, %234, %cst_67 {dimension_numbers = #tpu.dot_dimension_numbers<[1], [1], [0], [0], [0, 0, 1, 0], [], []>} : vector<16x8xf32>, vector<16x8xf32>, vector<16x16xf32> -> vector<16x16xf32>
    %237 = arith.addf %236, %3 : vector<16x16xf32>
    %cst_68 = arith.constant dense<0xFF800000> : vector<16xf32>
    %238 = vector.multi_reduction <maximumf>, %237, %cst_68 [1] : vector<16x16xf32> to vector<16xf32>
    %239 = vector.shape_cast %238 : vector<16xf32> to vector<16x1xf32>
    %240 = vector.broadcast %239 : vector<16x1xf32> to vector<16x16xf32>
    %241 = arith.subf %237, %240 : vector<16x16xf32>
    %242 = math.exp %241 : vector<16x16xf32>
    %cst_69 = arith.constant dense<0.000000e+00> : vector<16xf32>
    %243 = vector.multi_reduction <add>, %242, %cst_69 [1] : vector<16x16xf32> to vector<16xf32>
    %244 = vector.shape_cast %243 : vector<16xf32> to vector<16x1xf32>
    %245 = tpu.reciprocal %244 {approx = true} : vector<16x1xf32> -> vector<16x1xf32>
    %246 = vector.broadcast %245 : vector<16x1xf32> to vector<16x16xf32>
    %247 = arith.mulf %242, %246 : vector<16x16xf32>
    %cst_70 = arith.constant dense<0.000000e+00> : vector<16x8xf32>
    %248 = tpu.matmul %247, %235, %cst_70 {dimension_numbers = #tpu.dot_dimension_numbers<[1], [0], [0], [1], [0, 0, 1, 1], [], []>} : vector<16x16xf32>, vector<16x8xf32>, vector<16x8xf32> -> vector<16x8xf32>
    %249 = tpu.concatenate %200, %216, %232, %248 in 1 : vector<16x8xf32>, vector<16x8xf32>, vector<16x8xf32>, vector<16x8xf32> -> vector<16x32xf32>
    %cst_71 = arith.constant dense<0.000000e+00> : vector<16x32xf32>
    %250 = tpu.matmul %249, %170, %cst_71 {dimension_numbers = #tpu.dot_dimension_numbers<[1], [0], [0], [1], [0, 0, 1, 1], [], []>} : vector<16x32xf32>, vector<32x32xf32>, vector<16x32xf32> -> vector<16x32xf32>
    %251 = vector.broadcast %175 : vector<1x32xf32> to vector<16x32xf32>
    %252 = arith.addf %250, %251 : vector<16x32xf32>
    %cst_72 = arith.constant dense<0.000000e+00> : vector<16xf32>
    %253 = vector.multi_reduction <add>, %252, %cst_72 [1] : vector<16x32xf32> to vector<16xf32>
    %254 = vector.shape_cast %253 : vector<16xf32> to vector<16x1xf32>
    %cst_73 = arith.constant 3.200000e+01 : f32
    %255 = vector.broadcast %cst_73 : f32 to vector<16x1xf32>
    %256 = arith.divf %254, %255 : vector<16x1xf32>
    %257 = vector.broadcast %256 : vector<16x1xf32> to vector<16x32xf32>
    %258 = arith.subf %252, %257 : vector<16x32xf32>
    %259 = arith.mulf %258, %258 : vector<16x32xf32>
    %cst_74 = arith.constant dense<0.000000e+00> : vector<16xf32>
    %260 = vector.multi_reduction <add>, %259, %cst_74 [1] : vector<16x32xf32> to vector<16xf32>
    %261 = vector.shape_cast %260 : vector<16xf32> to vector<16x1xf32>
    %cst_75 = arith.constant 3.200000e+01 : f32
    %262 = vector.broadcast %cst_75 : f32 to vector<16x1xf32>
    %263 = arith.divf %261, %262 : vector<16x1xf32>
    %264 = vector.broadcast %256 : vector<16x1xf32> to vector<16x32xf32>
    %265 = arith.subf %252, %264 : vector<16x32xf32>
    %cst_76 = arith.constant 9.99999974E-6 : f32
    %266 = vector.broadcast %cst_76 : f32 to vector<16x1xf32>
    %267 = arith.addf %263, %266 : vector<16x1xf32>
    %268 = math.rsqrt %267 : vector<16x1xf32>
    %269 = vector.broadcast %268 : vector<16x1xf32> to vector<16x32xf32>
    %270 = arith.mulf %265, %269 : vector<16x32xf32>
    %271 = vector.broadcast %176 : vector<1x32xf32> to vector<16x32xf32>
    %272 = arith.mulf %270, %271 : vector<16x32xf32>
    %273 = vector.broadcast %177 : vector<1x32xf32> to vector<16x32xf32>
    %274 = arith.addf %272, %273 : vector<16x32xf32>
    %275 = arith.addf %274, %164 : vector<16x32xf32>
    %cst_77 = arith.constant dense<0.000000e+00> : vector<16x128xf32>
    %276 = tpu.matmul %275, %171, %cst_77 {dimension_numbers = #tpu.dot_dimension_numbers<[1], [0], [0], [1], [0, 0, 1, 1], [], []>} : vector<16x32xf32>, vector<32x128xf32>, vector<16x128xf32> -> vector<16x128xf32>
    %277 = vector.broadcast %178 : vector<1x128xf32> to vector<16x128xf32>
    %278 = arith.addf %276, %277 : vector<16x128xf32>
    %cst_78 = arith.constant 5.000000e-01 : f32
    %279 = vector.broadcast %cst_78 : f32 to vector<16x128xf32>
    %280 = arith.mulf %278, %279 : vector<16x128xf32>
    %cst_79 = arith.constant 4.471500e-02 : f32
    %281 = vector.broadcast %cst_79 : f32 to vector<16x128xf32>
    %282 = arith.mulf %281, %278 : vector<16x128xf32>
    %283 = arith.mulf %282, %278 : vector<16x128xf32>
    %284 = arith.mulf %283, %278 : vector<16x128xf32>
    %285 = arith.addf %278, %284 : vector<16x128xf32>
    %cst_80 = arith.constant 0.797884583 : f32
    %286 = vector.broadcast %cst_80 : f32 to vector<16x128xf32>
    %287 = arith.mulf %286, %285 : vector<16x128xf32>
    %288 = math.tanh %287 : vector<16x128xf32>
    %cst_81 = arith.constant 1.000000e+00 : f32
    %289 = vector.broadcast %cst_81 : f32 to vector<16x128xf32>
    %290 = arith.addf %289, %288 : vector<16x128xf32>
    %291 = arith.mulf %280, %290 : vector<16x128xf32>
    %cst_82 = arith.constant dense<0.000000e+00> : vector<16x32xf32>
    %292 = tpu.matmul %291, %173, %cst_82 {dimension_numbers = #tpu.dot_dimension_numbers<[1], [0], [0], [1], [0, 0, 1, 1], [], []>} : vector<16x128xf32>, vector<128x32xf32>, vector<16x32xf32> -> vector<16x32xf32>
    %293 = vector.broadcast %179 : vector<1x32xf32> to vector<16x32xf32>
    %294 = arith.addf %292, %293 : vector<16x32xf32>
    %cst_83 = arith.constant dense<0.000000e+00> : vector<16xf32>
    %295 = vector.multi_reduction <add>, %294, %cst_83 [1] : vector<16x32xf32> to vector<16xf32>
    %296 = vector.shape_cast %295 : vector<16xf32> to vector<16x1xf32>
    %cst_84 = arith.constant 3.200000e+01 : f32
    %297 = vector.broadcast %cst_84 : f32 to vector<16x1xf32>
    %298 = arith.divf %296, %297 : vector<16x1xf32>
    %299 = vector.broadcast %298 : vector<16x1xf32> to vector<16x32xf32>
    %300 = arith.subf %294, %299 : vector<16x32xf32>
    %301 = arith.mulf %300, %300 : vector<16x32xf32>
    %cst_85 = arith.constant dense<0.000000e+00> : vector<16xf32>
    %302 = vector.multi_reduction <add>, %301, %cst_85 [1] : vector<16x32xf32> to vector<16xf32>
    %303 = vector.shape_cast %302 : vector<16xf32> to vector<16x1xf32>
    %cst_86 = arith.constant 3.200000e+01 : f32
    %304 = vector.broadcast %cst_86 : f32 to vector<16x1xf32>
    %305 = arith.divf %303, %304 : vector<16x1xf32>
    %306 = vector.broadcast %298 : vector<16x1xf32> to vector<16x32xf32>
    %307 = arith.subf %294, %306 : vector<16x32xf32>
    %cst_87 = arith.constant 9.99999974E-6 : f32
    %308 = vector.broadcast %cst_87 : f32 to vector<16x1xf32>
    %309 = arith.addf %305, %308 : vector<16x1xf32>
    %310 = math.rsqrt %309 : vector<16x1xf32>
    %311 = vector.broadcast %310 : vector<16x1xf32> to vector<16x32xf32>
    %312 = arith.mulf %307, %311 : vector<16x32xf32>
    %313 = vector.broadcast %180 : vector<1x32xf32> to vector<16x32xf32>
    %314 = arith.mulf %312, %313 : vector<16x32xf32>
    %315 = vector.broadcast %181 : vector<1x32xf32> to vector<16x32xf32>
    %316 = arith.addf %314, %315 : vector<16x32xf32>
    %317 = arith.addf %316, %275 : vector<16x32xf32>
    %c2 = arith.constant 2 : index
    %c0_88 = arith.constant 0 : index
    %c0_89 = arith.constant 0 : index
    %318 = vector.load %arg4[%c2, %c0_88, %c0_89] : memref<3x8x128xf32, #tpu.memory_space<vmem>>, vector<1x8x128xf32>
    %319 = vector.shape_cast %318 : vector<1x8x128xf32> to vector<8x128xf32>
    %320 = vector.extract_strided_slice %319 {offsets = [0, 0], sizes = [1, 32], strides = [1, 1]} : vector<8x128xf32> to vector<1x32xf32>
    %321 = vector.extract_strided_slice %319 {offsets = [1, 0], sizes = [1, 32], strides = [1, 1]} : vector<8x128xf32> to vector<1x32xf32>
    %cst_90 = arith.constant dense<0.000000e+00> : vector<16xf32>
    %322 = vector.multi_reduction <add>, %317, %cst_90 [1] : vector<16x32xf32> to vector<16xf32>
    %323 = vector.shape_cast %322 : vector<16xf32> to vector<16x1xf32>
    %cst_91 = arith.constant 3.200000e+01 : f32
    %324 = vector.broadcast %cst_91 : f32 to vector<16x1xf32>
    %325 = arith.divf %323, %324 : vector<16x1xf32>
    %326 = vector.broadcast %325 : vector<16x1xf32> to vector<16x32xf32>
    %327 = arith.subf %317, %326 : vector<16x32xf32>
    %328 = arith.mulf %327, %327 : vector<16x32xf32>
    %cst_92 = arith.constant dense<0.000000e+00> : vector<16xf32>
    %329 = vector.multi_reduction <add>, %328, %cst_92 [1] : vector<16x32xf32> to vector<16xf32>
    %330 = vector.shape_cast %329 : vector<16xf32> to vector<16x1xf32>
    %cst_93 = arith.constant 3.200000e+01 : f32
    %331 = vector.broadcast %cst_93 : f32 to vector<16x1xf32>
    %332 = arith.divf %330, %331 : vector<16x1xf32>
    %333 = vector.broadcast %325 : vector<16x1xf32> to vector<16x32xf32>
    %334 = arith.subf %317, %333 : vector<16x32xf32>
    %cst_94 = arith.constant 9.99999974E-6 : f32
    %335 = vector.broadcast %cst_94 : f32 to vector<16x1xf32>
    %336 = arith.addf %332, %335 : vector<16x1xf32>
    %337 = math.rsqrt %336 : vector<16x1xf32>
    %338 = vector.broadcast %337 : vector<16x1xf32> to vector<16x32xf32>
    %339 = arith.mulf %334, %338 : vector<16x32xf32>
    %340 = vector.broadcast %320 : vector<1x32xf32> to vector<16x32xf32>
    %341 = arith.mulf %339, %340 : vector<16x32xf32>
    %342 = vector.broadcast %321 : vector<1x32xf32> to vector<16x32xf32>
    %343 = arith.addf %341, %342 : vector<16x32xf32>
    %c0_95 = arith.constant 0 : index
    %c0_96 = arith.constant 0 : index
    %344 = vector.load %arg5[%c0_95, %c0_96] : memref<32x128xf32, #tpu.memory_space<vmem>>, vector<32x128xf32>
    %cst_97 = arith.constant dense<0.000000e+00> : vector<16x128xf32>
    %345 = tpu.matmul %343, %344, %cst_97 {dimension_numbers = #tpu.dot_dimension_numbers<[1], [0], [0], [1], [0, 0, 1, 1], [], []>} : vector<16x32xf32>, vector<32x128xf32>, vector<16x128xf32> -> vector<16x128xf32>
    %c0_98 = arith.constant 0 : index
    %c0_99 = arith.constant 0 : index
    %346 = vector.load %arg6[%c0_98, %c0_99] : memref<16x128xf32, #tpu.memory_space<vmem>>, vector<16x128xf32>
    tpu.vector_store %arg6[%c0_98, %c0_99], %345 {strides = array<i32>} : memref<16x128xf32, #tpu.memory_space<vmem>>, vector<16x128xf32>,
    return
  }
}

</mosaic_0001>

<llo_original>
// kernel: decoder_only_transformer.1
$region0: #{decoder_only_transformer.1}
  #allocation0 [shape = 'u32[]', space=smem, size = 0x4, offset = 0x4, fixed_abs, tag = 'smem constant byte address 0x4 - core index']
  #allocation1 [shape = 'u32[72,128]{1,0:T(1,128)}', space=vmem, size = 0x9000, scoped, tag = 'internal scratch']
  %s0 = inlined_call_operand.vmem [shape: s32[16,1], index: 0, kind: input, shape index: {}]
  %s1 = inlined_call_operand.vmem [shape: f32[96,32], index: 1, kind: input, shape index: {}]
  %s2 = inlined_call_operand.vmem [shape: f32[2,32,256], index: 2, kind: input, shape index: {}]
  %s3 = inlined_call_operand.vmem [shape: f32[2,128,32], index: 3, kind: input, shape index: {}]
  %s4 = inlined_call_operand.vmem [shape: f32[3,8,128], index: 4, kind: input, shape index: {}]
  %s5 = inlined_call_operand.vmem [shape: f32[32,128], index: 5, kind: input, shape index: {}]
  %s6 = inlined_call_operand.vmem [shape: f32[16,128], index: 6, kind: output, shape index: {}]
  %s7 = sld [smem:[#allocation0]]
  $region34: #{decoder_only_transformer.1} parent=0
    _
  %s9 = ssub.s32 1, %s7
  %s10 = scalar_select 0, %s9, %s7
  // Predicated region
  $region2: #{decoder_only_transformer.1} parent=0 // pred_check
    _
  $region3: #{decoder_only_transformer.1} parent=0 // pred_check_branch
    %12 = sbr.rel (0) target = $region5
  $region4: #{decoder_only_transformer.1} parent=0 // pred_region
    _
  $region5: #{decoder_only_transformer.1} parent=0 // pred_fallthru
    _
  // Predicated region
  $region6: #{decoder_only_transformer.1} parent=0 // pred_check
    _
  $region7: #{decoder_only_transformer.1} parent=0 // pred_check_branch
    %14 = sbr.rel (0) target = $region9
  $region8: #{decoder_only_transformer.1} parent=0 // pred_region
    _
  $region9: #{decoder_only_transformer.1} parent=0 // pred_fallthru
    _
  // Predicated region
  $region10: #{decoder_only_transformer.1} parent=0 // pred_check
    _
  $region11: #{decoder_only_transformer.1} parent=0 // pred_check_branch
    %16 = sbr.rel (0) target = $region13
  $region12: #{decoder_only_transformer.1} parent=0 // pred_region
    _
  $region13: #{decoder_only_transformer.1} parent=0 // pred_fallthru
    _
  // Predicated region
  $region14: #{decoder_only_transformer.1} parent=0 // pred_check
    _
  $region15: #{decoder_only_transformer.1} parent=0 // pred_check_branch
    %18 = sbr.rel (0) target = $region17
  $region16: #{decoder_only_transformer.1} parent=0 // pred_region
    _
  $region17: #{decoder_only_transformer.1} parent=0 // pred_fallthru
    _
  // Predicated region
  $region18: #{decoder_only_transformer.1} parent=0 // pred_check
    _
  $region19: #{decoder_only_transformer.1} parent=0 // pred_check_branch
    %20 = sbr.rel (0) target = $region21
  $region20: #{decoder_only_transformer.1} parent=0 // pred_region
    _
  $region21: #{decoder_only_transformer.1} parent=0 // pred_fallthru
    _
  // Predicated region
  $region22: #{decoder_only_transformer.1} parent=0 // pred_check
    _
  $region23: #{decoder_only_transformer.1} parent=0 // pred_check_branch
    %22 = sbr.rel (0) target = $region25
  $region24: #{decoder_only_transformer.1} parent=0 // pred_region
    _
  $region25: #{decoder_only_transformer.1} parent=0 // pred_fallthru
    _
  %v23 = vld [vmem:[%s1] sm:$0xff]
  %v24 = vld [vmem:[%s1 + $0x8] sm:$0xff]
  %v25 = vld [vmem:[%s1 + $0x10] sm:$0xff]
  %v26 = vld [vmem:[%s1 + $0x18] sm:$0xff]
  %v27 = vld [vmem:[%s1 + $0x20] sm:$0xff]
  %v28 = vld [vmem:[%s1 + $0x28] sm:$0xff]
  %v29 = vld [vmem:[%s1 + $0x30] sm:$0xff]
  %v30 = vld [vmem:[%s1 + $0x38] sm:$0xff]
  %v31 = vld [vmem:[%s1 + $0x40] sm:$0xff]
  %v32 = vld [vmem:[%s1 + $0x48] sm:$0xff]
  %v33 = vld [vmem:[%s1 + $0x50] sm:$0xff]
  %v34 = vld [vmem:[%s1 + $0x58] sm:$0xff]
  %v35 = vld [vmem:[%s0] sm:$0xff]
  %v36 = vld [vmem:[%s0 + $0x8] sm:$0xff]
  %v37 = vlaneseq
  %v38 = vand.u32 %v37, 127
  %39 = vset.pattern.permute.xlu0 0
  %40 = vperm.xlu0 %39, %v35
  %v41 = vpop.permute.xlu0 %40
  %42 = vset.pattern.permute.xlu0 0
  %43 = vperm.xlu0 %42, %v36
  %v44 = vpop.permute.xlu0 %43
  %vm45 = vcmp.eq.s32.totalorder %v41, %v38
  %vm46 = vcmp.eq.s32.totalorder %v44, %v38
  %v47 = vsel %vm45, 1, 0
  %v48 = vsel %vm46, 1, 0
  %v49 = vcvt.s32.f32 %v47
  %v50 = vcvt.s32.f32 %v48
  %vm51 = vcmask 523264
  %v53 = vsel %vm51, %v49, 0
  %v56 = vsel %vm51, %v50, 0
  %58 = vmatpush.msra.mxu0 0.0
  %59 = vmatpush.msra.mxu0 0.0
  %60 = vmatpush.msra.mxu0 0.0
  %61 = vmatpush.msra.mxu0 0.0
  %62 = vmatpush.msra.mxu0 0.0
  %63 = vmatpush.msra.mxu0 0.0
  %64 = vmatpush.msra.mxu0 0.0
  %65 = vmatpush.msra.mxu0 0.0
  %66 = vmatpush.msra.mxu0 %v30
  %67 = vmatpush.msra.mxu0 %v29
  %68 = vmatpush.msra.mxu0 %v28
  %69 = vmatpush.msra.mxu0 %v27
  %70 = vmatpush.msra.mxu0 %v26
  %71 = vmatpush.msra.mxu0 %v25
  %72 = vmatpush.msra.mxu0 %v24
  %73 = vmatpush.msra.mxu0 %v23
  %74 = vmatmul.f32.gmra.mxu0 %v53
  %v75 = vpop.f32.mrf.mxu0
  %v76 = vadd.f32 %v31, %v75
  %77 = vmatmul.f32.gmra.mxu0 %v56
  %v78 = vpop.f32.mrf.mxu0
  %v79 = vadd.f32 %v32, %v78
  %80 = vdwg.mxu0
  %v81 = vld [vmem:[%s2] sm:$0xff]
  %v82 = vld [vmem:[%s2 + $0x8] sm:$0xff]
  %v83 = vld [vmem:[%s2 + $0x10] sm:$0xff]
  %v84 = vld [vmem:[%s2 + $0x18] sm:$0xff]
  %v85 = vld [vmem:[%s2 + $0x20] sm:$0xff]
  %v86 = vld [vmem:[%s2 + $0x28] sm:$0xff]
  %v87 = vld [vmem:[%s2 + $0x30] sm:$0xff]
  %v88 = vld [vmem:[%s2 + $0x38] sm:$0xff]
  %v89 = vld [vmem:[%s4] sm:$0xff]
  %v90 = vld [vmem:[%s3] sm:$0xff]
  %v91 = vld [vmem:[%s3 + $0x8] sm:$0xff]
  %v92 = vld [vmem:[%s3 + $0x10] sm:$0xff]
  %v93 = vld [vmem:[%s3 + $0x18] sm:$0xff]
  %v94 = vld [vmem:[%s3 + $0x20] sm:$0xff]
  %v95 = vld [vmem:[%s3 + $0x28] sm:$0xff]
  %v96 = vld [vmem:[%s3 + $0x30] sm:$0xff]
  %v97 = vld [vmem:[%s3 + $0x38] sm:$0xff]
  %v98 = vld [vmem:[%s3 + $0x40] sm:$0xff]
  %v99 = vld [vmem:[%s3 + $0x48] sm:$0xff]
  %v100 = vld [vmem:[%s3 + $0x50] sm:$0xff]
  %v101 = vld [vmem:[%s3 + $0x58] sm:$0xff]
  %v102 = vld [vmem:[%s3 + $0x60] sm:$0xff]
  %v103 = vld [vmem:[%s3 + $0x68] sm:$0xff]
  %v104 = vld [vmem:[%s3 + $0x70] sm:$0xff]
  %v105 = vld [vmem:[%s3 + $0x78] sm:$0xff]
  %v106 = vperm.slane %v89, 0
  %vm107 = vcmask 261120
  %v109 = vsel %vm107, %v76, 0
  %v112 = vsel %vm107, %v79, 0
  %114 = vmatpush.msra.mxu0 0.0
  %115 = vmatpush.msra.mxu0 0.0
  %116 = vmatpush.msra.mxu0 0.0
  %117 = vmatpush.msra.mxu0 0.0
  %118 = vmatpush.msra.mxu0 0.0
  %119 = vmatpush.msra.mxu0 0.0
  %120 = vmatpush.msra.mxu0 0.0
  %121 = vmatpush.msra.mxu0 0.0
  %122 = vmatpush.msra.mxu0 0.0
  %123 = vmatpush.msra.mxu0 0.0
  %124 = vmatpush.msra.mxu0 0.0
  %125 = vmatpush.msra.mxu0 0.0
  %126 = vmatpush.msra.mxu0 %v87
  %127 = vmatpush.msra.mxu0 %v85
  %128 = vmatpush.msra.mxu0 %v83
  %129 = vmatpush.msra.mxu0 %v81
  %130 = vmatmul.f32.gmra.mxu0 %v109
  %v131 = vpop.f32.mrf.mxu0
  %v132 = vadd.f32 %v106, %v131
  %133 = vmatmul.f32.gmra.mxu0 %v112
  %v134 = vpop.f32.mrf.mxu0
  %v135 = vadd.f32 %v106, %v134
  %136 = vdwg.mxu0
  %139 = vrot.lane.b32.xlu0 %v132, 96
  %v140 = vpop.permute.xlu0 %139
  %141 = vrot.lane.b32.xlu0 %v135, 96
  %v142 = vpop.permute.xlu0 %141
  %vm143 = vcmask 64512
  %v144 = vsel %vm143, %v132, 0
  %v146 = vsel %vm143, %v135, 0
  %v148 = vsel %vm143, %v140, 0
  %v150 = vsel %vm143, %v142, 0
  %152 = vmatpush.xpose.msra.mxu0 0.0
  %153 = vmatpush.xpose.msra.mxu0 0.0
  %154 = vmatpush.xpose.msra.mxu0 0.0
  %155 = vmatpush.xpose.msra.mxu0 0.0
  %156 = vmatpush.xpose.msra.mxu0 0.0
  %157 = vmatpush.xpose.msra.mxu0 0.0
  %158 = vmatpush.xpose.msra.mxu0 0.0
  %159 = vmatpush.xpose.msra.mxu0 0.0
  %160 = vmatpush.xpose.msra.mxu0 0.0
  %161 = vmatpush.xpose.msra.mxu0 0.0
  %162 = vmatpush.xpose.msra.mxu0 0.0
  %163 = vmatpush.xpose.msra.mxu0 0.0
  %164 = vmatpush.xpose.msra.mxu0 0.0
  %165 = vmatpush.xpose.msra.mxu0 0.0
  %166 = vmatpush.xpose.msra.mxu0 %v150
  %167 = vmatpush.xpose.msra.mxu0 %v148
  %168 = vmatmul.f32.gmra.mxu0 %v144
  %v169 = vpop.f32.mrf.mxu0
  %v170 = vadd.f32 %v33, %v169
  %171 = vmatmul.f32.gmra.mxu0 %v146
  %v172 = vpop.f32.mrf.mxu0
  %v173 = vadd.f32 %v34, %v172
  %174 = vdwg.mxu0
  %vm175 = vcmask 130048
  %v176 = vsel %vm175, %v170, -inf
  %177 = vmax.xlane.f32.xlu0 %v176
  %v178 = vpop.xlane.xlu0 %177
  %v179 = vsel %vm175, %v173, -inf
  %180 = vmax.xlane.f32.xlu0 %v179
  %v181 = vpop.xlane.xlu0 %180
  %v182 = vsub.f32 %v170, %v178
  %v183 = vsub.f32 %v173, %v181
  %v184 = vmul.f32 %v182, 1.442695
  %v185 = vpow.pop %v184
  %v186 = vmul.f32 %v183, 1.442695
  %v187 = vpow.pop %v186
  %v188 = vsel %vm175, %v185, 0.0
  %189 = vadd.xlane.f32.xlu0 %v188
  %v190 = vpop.xlane.xlu0 %189
  %v191 = vsel %vm175, %v187, 0.0
  %192 = vadd.xlane.f32.xlu0 %v191
  %v193 = vpop.xlane.xlu0 %192
  %v194 = vrcp.pop %v190
  %v195 = vrcp.pop %v193
  %v196 = vmul.f32 %v185, %v194
  %v197 = vmul.f32 %v187, %v195
  %198 = vrot.lane.b32.xlu0 %v132, 64
  %v199 = vpop.permute.xlu0 %198
  %200 = vrot.lane.b32.xlu0 %v135, 64
  %v201 = vpop.permute.xlu0 %200
  %v205 = vsel %vm175, %v196, 0
  %v208 = vsel %vm175, %v197, 0
  %210 = vmatpush.msra.mxu0 0.0
  %211 = vmatpush.msra.mxu0 0.0
  %212 = vmatpush.msra.mxu0 0.0
  %213 = vmatpush.msra.mxu0 0.0
  %214 = vmatpush.msra.mxu0 0.0
  %215 = vmatpush.msra.mxu0 0.0
  %216 = vmatpush.msra.mxu0 0.0
  %217 = vmatpush.msra.mxu0 0.0
  %218 = vmatpush.msra.mxu0 0.0
  %219 = vmatpush.msra.mxu0 0.0
  %220 = vmatpush.msra.mxu0 0.0
  %221 = vmatpush.msra.mxu0 0.0
  %222 = vmatpush.msra.mxu0 0.0
  %223 = vmatpush.msra.mxu0 0.0
  %224 = vmatpush.msra.mxu0 %v201
  %225 = vmatpush.msra.mxu0 %v199
  %226 = vmatmul.f32.gmra.mxu0 %v205
  %v227 = vpop.f32.mrf.mxu0
  %v228 = vadd.f32 0.0, %v227
  %229 = vmatmul.f32.gmra.mxu0 %v208
  %v230 = vpop.f32.mrf.mxu0
  %v231 = vadd.f32 0.0, %v230
  %232 = vdwg.mxu0
  %233 = vrot.lane.b32.xlu0 %v132, 120
  %v234 = vpop.permute.xlu0 %233
  %235 = vrot.lane.b32.xlu0 %v135, 120
  %v236 = vpop.permute.xlu0 %235
  %237 = vrot.lane.b32.xlu0 %v132, 88
  %v238 = vpop.permute.xlu0 %237
  %239 = vrot.lane.b32.xlu0 %v135, 88
  %v240 = vpop.permute.xlu0 %239
  %v241 = vsel %vm143, %v234, 0
  %v243 = vsel %vm143, %v236, 0
  %v245 = vsel %vm143, %v238, 0
  %v247 = vsel %vm143, %v240, 0
  %249 = vmatpush.xpose.msra.mxu0 0.0
  %250 = vmatpush.xpose.msra.mxu0 0.0
  %251 = vmatpush.xpose.msra.mxu0 0.0
  %252 = vmatpush.xpose.msra.mxu0 0.0
  %253 = vmatpush.xpose.msra.mxu0 0.0
  %254 = vmatpush.xpose.msra.mxu0 0.0
  %255 = vmatpush.xpose.msra.mxu0 0.0
  %256 = vmatpush.xpose.msra.mxu0 0.0
  %257 = vmatpush.xpose.msra.mxu0 0.0
  %258 = vmatpush.xpose.msra.mxu0 0.0
  %259 = vmatpush.xpose.msra.mxu0 0.0
  %260 = vmatpush.xpose.msra.mxu0 0.0
  %261 = vmatpush.xpose.msra.mxu0 0.0
  %262 = vmatpush.xpose.msra.mxu0 0.0
  %263 = vmatpush.xpose.msra.mxu0 %v247
  %264 = vmatpush.xpose.msra.mxu0 %v245
  %265 = vmatmul.f32.gmra.mxu0 %v241
  %v266 = vpop.f32.mrf.mxu0
  %v267 = vadd.f32 %v33, %v266
  %268 = vmatmul.f32.gmra.mxu0 %v243
  %v269 = vpop.f32.mrf.mxu0
  %v270 = vadd.f32 %v34, %v269
  %271 = vdwg.mxu0
  %v272 = vsel %vm175, %v267, -inf
  %273 = vmax.xlane.f32.xlu0 %v272
  %v274 = vpop.xlane.xlu0 %273
  %v275 = vsel %vm175, %v270, -inf
  %276 = vmax.xlane.f32.xlu0 %v275
  %v277 = vpop.xlane.xlu0 %276
  %v278 = vsub.f32 %v267, %v274
  %v279 = vsub.f32 %v270, %v277
  %v280 = vmul.f32 %v278, 1.442695
  %v281 = vpow.pop %v280
  %v282 = vmul.f32 %v279, 1.442695
  %v283 = vpow.pop %v282
  %v284 = vsel %vm175, %v281, 0.0
  %285 = vadd.xlane.f32.xlu0 %v284
  %v286 = vpop.xlane.xlu0 %285
  %v287 = vsel %vm175, %v283, 0.0
  %288 = vadd.xlane.f32.xlu0 %v287
  %v289 = vpop.xlane.xlu0 %288
  %v290 = vrcp.pop %v286
  %v291 = vrcp.pop %v289
  %v292 = vmul.f32 %v281, %v290
  %v293 = vmul.f32 %v283, %v291
  %294 = vrot.lane.b32.xlu0 %v132, 56
  %v295 = vpop.permute.xlu0 %294
  %296 = vrot.lane.b32.xlu0 %v135, 56
  %v297 = vpop.permute.xlu0 %296
  %v301 = vsel %vm175, %v292, 0
  %v304 = vsel %vm175, %v293, 0
  %306 = vmatpush.msra.mxu0 0.0
  %307 = vmatpush.msra.mxu0 0.0
  %308 = vmatpush.msra.mxu0 0.0
  %309 = vmatpush.msra.mxu0 0.0
  %310 = vmatpush.msra.mxu0 0.0
  %311 = vmatpush.msra.mxu0 0.0
  %312 = vmatpush.msra.mxu0 0.0
  %313 = vmatpush.msra.mxu0 0.0
  %314 = vmatpush.msra.mxu0 0.0
  %315 = vmatpush.msra.mxu0 0.0
  %316 = vmatpush.msra.mxu0 0.0
  %317 = vmatpush.msra.mxu0 0.0
  %318 = vmatpush.msra.mxu0 0.0
  %319 = vmatpush.msra.mxu0 0.0
  %320 = vmatpush.msra.mxu0 %v297
  %321 = vmatpush.msra.mxu0 %v295
  %322 = vmatmul.f32.gmra.mxu0 %v301
  %v323 = vpop.f32.mrf.mxu0
  %v324 = vadd.f32 0.0, %v323
  %325 = vmatmul.f32.gmra.mxu0 %v304
  %v326 = vpop.f32.mrf.mxu0
  %v327 = vadd.f32 0.0, %v326
  %328 = vdwg.mxu0
  %329 = vrot.lane.b32.xlu0 %v132, 112
  %v330 = vpop.permute.xlu0 %329
  %331 = vrot.lane.b32.xlu0 %v135, 112
  %v332 = vpop.permute.xlu0 %331
  %333 = vrot.lane.b32.xlu0 %v132, 80
  %v334 = vpop.permute.xlu0 %333
  %335 = vrot.lane.b32.xlu0 %v135, 80
  %v336 = vpop.permute.xlu0 %335
  %v337 = vsel %vm143, %v330, 0
  %v339 = vsel %vm143, %v332, 0
  %v341 = vsel %vm143, %v334, 0
  %v343 = vsel %vm143, %v336, 0
  %345 = vmatpush.xpose.msra.mxu0 0.0
  %346 = vmatpush.xpose.msra.mxu0 0.0
  %347 = vmatpush.xpose.msra.mxu0 0.0
  %348 = vmatpush.xpose.msra.mxu0 0.0
  %349 = vmatpush.xpose.msra.mxu0 0.0
  %350 = vmatpush.xpose.msra.mxu0 0.0
  %351 = vmatpush.xpose.msra.mxu0 0.0
  %352 = vmatpush.xpose.msra.mxu0 0.0
  %353 = vmatpush.xpose.msra.mxu0 0.0
  %354 = vmatpush.xpose.msra.mxu0 0.0
  %355 = vmatpush.xpose.msra.mxu0 0.0
  %356 = vmatpush.xpose.msra.mxu0 0.0
  %357 = vmatpush.xpose.msra.mxu0 0.0
  %358 = vmatpush.xpose.msra.mxu0 0.0
  %359 = vmatpush.xpose.msra.mxu0 %v343
  %360 = vmatpush.xpose.msra.mxu0 %v341
  %361 = vmatmul.f32.gmra.mxu0 %v337
  %v362 = vpop.f32.mrf.mxu0
  %v363 = vadd.f32 %v33, %v362
  %364 = vmatmul.f32.gmra.mxu0 %v339
  %v365 = vpop.f32.mrf.mxu0
  %v366 = vadd.f32 %v34, %v365
  %367 = vdwg.mxu0
  %v368 = vsel %vm175, %v363, -inf
  %369 = vmax.xlane.f32.xlu0 %v368
  %v370 = vpop.xlane.xlu0 %369
  %v371 = vsel %vm175, %v366, -inf
  %372 = vmax.xlane.f32.xlu0 %v371
  %v373 = vpop.xlane.xlu0 %372
  %v374 = vsub.f32 %v363, %v370
  %v375 = vsub.f32 %v366, %v373
  %v376 = vmul.f32 %v374, 1.442695
  %v377 = vpow.pop %v376
  %v378 = vmul.f32 %v375, 1.442695
  %v379 = vpow.pop %v378
  %v380 = vsel %vm175, %v377, 0.0
  %381 = vadd.xlane.f32.xlu0 %v380
  %v382 = vpop.xlane.xlu0 %381
  %v383 = vsel %vm175, %v379, 0.0
  %384 = vadd.xlane.f32.xlu0 %v383
  %v385 = vpop.xlane.xlu0 %384
  %v386 = vrcp.pop %v382
  %v387 = vrcp.pop %v385
  %v388 = vmul.f32 %v377, %v386
  %v389 = vmul.f32 %v379, %v387
  %390 = vrot.lane.b32.xlu0 %v132, 48
  %v391 = vpop.permute.xlu0 %390
  %392 = vrot.lane.b32.xlu0 %v135, 48
  %v393 = vpop.permute.xlu0 %392
  %v397 = vsel %vm175, %v388, 0
  %v400 = vsel %vm175, %v389, 0
  %402 = vmatpush.msra.mxu0 0.0
  %403 = vmatpush.msra.mxu0 0.0
  %404 = vmatpush.msra.mxu0 0.0
  %405 = vmatpush.msra.mxu0 0.0
  %406 = vmatpush.msra.mxu0 0.0
  %407 = vmatpush.msra.mxu0 0.0
  %408 = vmatpush.msra.mxu0 0.0
  %409 = vmatpush.msra.mxu0 0.0
  %410 = vmatpush.msra.mxu0 0.0
  %411 = vmatpush.msra.mxu0 0.0
  %412 = vmatpush.msra.mxu0 0.0
  %413 = vmatpush.msra.mxu0 0.0
  %414 = vmatpush.msra.mxu0 0.0
  %415 = vmatpush.msra.mxu0 0.0
  %416 = vmatpush.msra.mxu0 %v393
  %417 = vmatpush.msra.mxu0 %v391
  %418 = vmatmul.f32.gmra.mxu0 %v397
  %v419 = vpop.f32.mrf.mxu0
  %v420 = vadd.f32 0.0, %v419
  %421 = vmatmul.f32.gmra.mxu0 %v400
  %v422 = vpop.f32.mrf.mxu0
  %v423 = vadd.f32 0.0, %v422
  %424 = vdwg.mxu0
  %425 = vrot.lane.b32.xlu0 %v132, 104
  %v426 = vpop.permute.xlu0 %425
  %427 = vrot.lane.b32.xlu0 %v135, 104
  %v428 = vpop.permute.xlu0 %427
  %429 = vrot.lane.b32.xlu0 %v132, 72
  %v430 = vpop.permute.xlu0 %429
  %431 = vrot.lane.b32.xlu0 %v135, 72
  %v432 = vpop.permute.xlu0 %431
  %v433 = vsel %vm143, %v426, 0
  %v435 = vsel %vm143, %v428, 0
  %v437 = vsel %vm143, %v430, 0
  %v439 = vsel %vm143, %v432, 0
  %441 = vmatpush.xpose.msra.mxu0 0.0
  %442 = vmatpush.xpose.msra.mxu0 0.0
  %443 = vmatpush.xpose.msra.mxu0 0.0
  %444 = vmatpush.xpose.msra.mxu0 0.0
  %445 = vmatpush.xpose.msra.mxu0 0.0
  %446 = vmatpush.xpose.msra.mxu0 0.0
  %447 = vmatpush.xpose.msra.mxu0 0.0
  %448 = vmatpush.xpose.msra.mxu0 0.0
  %449 = vmatpush.xpose.msra.mxu0 0.0
  %450 = vmatpush.xpose.msra.mxu0 0.0
  %451 = vmatpush.xpose.msra.mxu0 0.0
  %452 = vmatpush.xpose.msra.mxu0 0.0
  %453 = vmatpush.xpose.msra.mxu0 0.0
  %454 = vmatpush.xpose.msra.mxu0 0.0
  %455 = vmatpush.xpose.msra.mxu0 %v439
  %456 = vmatpush.xpose.msra.mxu0 %v437
  %457 = vmatmul.f32.gmra.mxu0 %v433
  %v458 = vpop.f32.mrf.mxu0
  %v459 = vadd.f32 %v33, %v458
  %460 = vmatmul.f32.gmra.mxu0 %v435
  %v461 = vpop.f32.mrf.mxu0
  %v462 = vadd.f32 %v34, %v461
  %463 = vdwg.mxu0
  %v464 = vsel %vm175, %v459, -inf
  %465 = vmax.xlane.f32.xlu0 %v464
  %v466 = vpop.xlane.xlu0 %465
  %v467 = vsel %vm175, %v462, -inf
  %468 = vmax.xlane.f32.xlu0 %v467
  %v469 = vpop.xlane.xlu0 %468
  %v470 = vsub.f32 %v459, %v466
  %v471 = vsub.f32 %v462, %v469
  %v472 = vmul.f32 %v470, 1.442695
  %v473 = vpow.pop %v472
  %v474 = vmul.f32 %v471, 1.442695
  %v475 = vpow.pop %v474
  %v476 = vsel %vm175, %v473, 0.0
  %477 = vadd.xlane.f32.xlu0 %v476
  %v478 = vpop.xlane.xlu0 %477
  %v479 = vsel %vm175, %v475, 0.0
  %480 = vadd.xlane.f32.xlu0 %v479
  %v481 = vpop.xlane.xlu0 %480
  %v482 = vrcp.pop %v478
  %v483 = vrcp.pop %v481
  %v484 = vmul.f32 %v473, %v482
  %v485 = vmul.f32 %v475, %v483
  %486 = vrot.lane.b32.xlu0 %v132, 40
  %v487 = vpop.permute.xlu0 %486
  %488 = vrot.lane.b32.xlu0 %v135, 40
  %v489 = vpop.permute.xlu0 %488
  %v493 = vsel %vm175, %v484, 0
  %v496 = vsel %vm175, %v485, 0
  %498 = vmatpush.msra.mxu0 0.0
  %499 = vmatpush.msra.mxu0 0.0
  %500 = vmatpush.msra.mxu0 0.0
  %501 = vmatpush.msra.mxu0 0.0
  %502 = vmatpush.msra.mxu0 0.0
  %503 = vmatpush.msra.mxu0 0.0
  %504 = vmatpush.msra.mxu0 0.0
  %505 = vmatpush.msra.mxu0 0.0
  %506 = vmatpush.msra.mxu0 0.0
  %507 = vmatpush.msra.mxu0 0.0
  %508 = vmatpush.msra.mxu0 0.0
  %509 = vmatpush.msra.mxu0 0.0
  %510 = vmatpush.msra.mxu0 0.0
  %511 = vmatpush.msra.mxu0 0.0
  %512 = vmatpush.msra.mxu0 %v489
  %513 = vmatpush.msra.mxu0 %v487
  %514 = vmatmul.f32.gmra.mxu0 %v493
  %v515 = vpop.f32.mrf.mxu0
  %v516 = vadd.f32 0.0, %v515
  %517 = vmatmul.f32.gmra.mxu0 %v496
  %v518 = vpop.f32.mrf.mxu0
  %v519 = vadd.f32 0.0, %v518
  %520 = vdwg.mxu0
  %523 = vrot.lane.b32.xlu0 %v324, 8
  %v524 = vpop.permute.xlu0 %523
  %525 = vrot.lane.b32.xlu0 %v327, 8
  %v526 = vpop.permute.xlu0 %525
  %531 = vrot.lane.b32.xlu0 %v420, 16
  %v532 = vpop.permute.xlu0 %531
  %533 = vrot.lane.b32.xlu0 %v423, 16
  %v534 = vpop.permute.xlu0 %533
  %539 = vrot.lane.b32.xlu0 %v516, 24
  %v540 = vpop.permute.xlu0 %539
  %541 = vrot.lane.b32.xlu0 %v519, 24
  %v542 = vpop.permute.xlu0 %541
  %v545 = vsel %vm143, %v228, %v524
  %v546 = vsel %vm143, %v231, %v526
  %v547 = vsel %vm175, %v545, %v532
  %v548 = vsel %vm175, %v546, %v534
  %vm549 = vcmask 195584
  %v550 = vsel %vm549, %v547, %v540
  %v551 = vsel %vm549, %v548, %v542
  %v552 = vperm.slane %v89, 1
  %557 = vrot.lane.b32.xlu0 %v81, 32
  %v558 = vpop.permute.xlu0 %557
  %559 = vrot.lane.b32.xlu0 %v83, 32
  %v560 = vpop.permute.xlu0 %559
  %561 = vrot.lane.b32.xlu0 %v85, 32
  %v562 = vpop.permute.xlu0 %561
  %563 = vrot.lane.b32.xlu0 %v87, 32
  %v564 = vpop.permute.xlu0 %563
  %v570 = vsel %vm107, %v550, 0
  %v573 = vsel %vm107, %v551, 0
  %575 = vmatpush.msra.mxu0 0.0
  %576 = vmatpush.msra.mxu0 0.0
  %577 = vmatpush.msra.mxu0 0.0
  %578 = vmatpush.msra.mxu0 0.0
  %579 = vmatpush.msra.mxu0 0.0
  %580 = vmatpush.msra.mxu0 0.0
  %581 = vmatpush.msra.mxu0 0.0
  %582 = vmatpush.msra.mxu0 0.0
  %583 = vmatpush.msra.mxu0 0.0
  %584 = vmatpush.msra.mxu0 0.0
  %585 = vmatpush.msra.mxu0 0.0
  %586 = vmatpush.msra.mxu0 0.0
  %587 = vmatpush.msra.mxu0 %v564
  %588 = vmatpush.msra.mxu0 %v562
  %589 = vmatpush.msra.mxu0 %v560
  %590 = vmatpush.msra.mxu0 %v558
  %591 = vmatmul.f32.gmra.mxu0 %v570
  %v592 = vpop.f32.mrf.mxu0
  %v593 = vadd.f32 %v552, %v592
  %594 = vmatmul.f32.gmra.mxu0 %v573
  %v595 = vpop.f32.mrf.mxu0
  %v596 = vadd.f32 %v552, %v595
  %597 = vdwg.mxu0
  %v598 = vsel %vm107, %v593, 0.0
  %599 = vadd.xlane.f32.xlu0 %v598
  %v600 = vpop.xlane.xlu0 %599
  %v601 = vsel %vm107, %v596, 0.0
  %602 = vadd.xlane.f32.xlu0 %v601
  %v603 = vpop.xlane.xlu0 %602
  %v604 = vrcp.pop 32.0
  %v605 = vmul.f32 32.0, %v604
  %v606 = vsub.f32 1.0, %v605
  %v607 = vmul.f32 %v604, %v606
  %v608 = vadd.f32 %v604, %v607
  %vm609 = vweird.f32 %v604
  %v610 = vsel %vm609, %v604, %v608
  %v611 = vmul.f32 %v600, %v610
  %v612 = vmul.f32 %v603, %v610
  %v613 = vsub.f32 %v593, %v611
  %v614 = vsub.f32 %v596, %v612
  %v615 = vmul.f32 %v613, %v613
  %v616 = vmul.f32 %v614, %v614
  %v617 = vsel %vm107, %v615, 0.0
  %618 = vadd.xlane.f32.xlu0 %v617
  %v619 = vpop.xlane.xlu0 %618
  %v620 = vsel %vm107, %v616, 0.0
  %621 = vadd.xlane.f32.xlu0 %v620
  %v622 = vpop.xlane.xlu0 %621
  %v623 = vmul.f32 %v619, %v610
  %v624 = vmul.f32 %v622, %v610
  %v625 = vadd.f32 %v623, 1e-05
  %v626 = vadd.f32 %v624, 1e-05
  %v627 = vrsqrt.pop %v625
  %v628 = vmul.f32 %v627, %v625
  %v629 = vmul.f32 %v628, %v627
  %v630 = vmul.f32 0.5, %v629
  %v631 = vsub.f32 1.5, %v630
  %v632 = vmul.f32 %v627, %v631
  %vm633 = vweird.f32 %v625
  %vm634 = vweird.f32 %v627
  %vm635 = vmor %vm633, %vm634
  %v636 = vsel %vm635, %v627, %v632
  %v637 = vrsqrt.pop %v626
  %v638 = vmul.f32 %v637, %v626
  %v639 = vmul.f32 %v638, %v637
  %v640 = vmul.f32 0.5, %v639
  %v641 = vsub.f32 1.5, %v640
  %v642 = vmul.f32 %v637, %v641
  %vm643 = vweird.f32 %v626
  %vm644 = vweird.f32 %v637
  %vm645 = vmor %vm643, %vm644
  %v646 = vsel %vm645, %v637, %v642
  %v647 = vmul.f32 %v613, %v636
  %v648 = vmul.f32 %v614, %v646
  %v649 = vperm.slane %v89, 2
  %v650 = vmul.f32 %v647, %v649
  %v651 = vmul.f32 %v648, %v649
  %v652 = vperm.slane %v89, 3
  %v653 = vadd.f32 %v650, %v652
  %v654 = vadd.f32 %v651, %v652
  %v655 = vadd.f32 %v653, %v76
  %v656 = vadd.f32 %v654, %v79
  %v657 = vperm.slane %v89, 4
  %v659 = vsel %vm107, %v655, 0
  %v662 = vsel %vm107, %v656, 0
  %664 = vmatpush.msra.mxu0 0.0
  %665 = vmatpush.msra.mxu0 0.0
  %666 = vmatpush.msra.mxu0 0.0
  %667 = vmatpush.msra.mxu0 0.0
  %668 = vmatpush.msra.mxu0 0.0
  %669 = vmatpush.msra.mxu0 0.0
  %670 = vmatpush.msra.mxu0 0.0
  %671 = vmatpush.msra.mxu0 0.0
  %672 = vmatpush.msra.mxu0 0.0
  %673 = vmatpush.msra.mxu0 0.0
  %674 = vmatpush.msra.mxu0 0.0
  %675 = vmatpush.msra.mxu0 0.0
  %676 = vmatpush.msra.mxu0 %v88
  %677 = vmatpush.msra.mxu0 %v86
  %678 = vmatpush.msra.mxu0 %v84
  %679 = vmatpush.msra.mxu0 %v82
  %680 = vmatmul.f32.gmra.mxu0 %v659
  %v681 = vpop.f32.mrf.mxu0
  %v682 = vadd.f32 %v657, %v681
  %683 = vmatmul.f32.gmra.mxu0 %v662
  %v684 = vpop.f32.mrf.mxu0
  %v685 = vadd.f32 %v657, %v684
  %686 = vdwg.mxu0
  %v687 = vmul.f32 %v682, 0.5
  %v688 = vmul.f32 %v685, 0.5
  %v689 = vmul.f32 %v682, 0.044715
  %v690 = vmul.f32 %v685, 0.044715
  %v691 = vmul.f32 %v689, %v682
  %v692 = vmul.f32 %v690, %v685
  %v693 = vmul.f32 %v691, %v682
  %v694 = vmul.f32 %v692, %v685
  %v695 = vadd.f32 %v682, %v693
  %v696 = vadd.f32 %v685, %v694
  %v697 = vmul.f32 %v695, 0.7978846
  %v698 = vmul.f32 %v696, 0.7978846
  %v699 = vtanh.pop %v697
  %v700 = vtanh.pop %v698
  %v701 = vadd.f32 %v699, 1.0
  %v702 = vadd.f32 %v700, 1.0
  %v703 = vmul.f32 %v687, %v701
  %v704 = vmul.f32 %v688, %v702
  %v705 = vperm.slane %v89, 5
  %706 = vmatpush.msra.mxu0 %v105
  %707 = vmatpush.msra.mxu0 %v104
  %708 = vmatpush.msra.mxu0 %v103
  %709 = vmatpush.msra.mxu0 %v102
  %710 = vmatpush.msra.mxu0 %v101
  %711 = vmatpush.msra.mxu0 %v100
  %712 = vmatpush.msra.mxu0 %v99
  %713 = vmatpush.msra.mxu0 %v98
  %714 = vmatpush.msra.mxu0 %v97
  %715 = vmatpush.msra.mxu0 %v96
  %716 = vmatpush.msra.mxu0 %v95
  %717 = vmatpush.msra.mxu0 %v94
  %718 = vmatpush.msra.mxu0 %v93
  %719 = vmatpush.msra.mxu0 %v92
  %720 = vmatpush.msra.mxu0 %v91
  %721 = vmatpush.msra.mxu0 %v90
  %722 = vmatmul.f32.gmra.mxu0 %v703
  %v723 = vpop.f32.mrf.mxu0
  %v724 = vadd.f32 %v705, %v723
  %725 = vmatmul.f32.gmra.mxu0 %v704
  %v726 = vpop.f32.mrf.mxu0
  %v727 = vadd.f32 %v705, %v726
  %728 = vdwg.mxu0
  %v729 = vsel %vm107, %v724, 0.0
  %730 = vadd.xlane.f32.xlu0 %v729
  %v731 = vpop.xlane.xlu0 %730
  %v732 = vsel %vm107, %v727, 0.0
  %733 = vadd.xlane.f32.xlu0 %v732
  %v734 = vpop.xlane.xlu0 %733
  %v735 = vmul.f32 %v731, %v610
  %v736 = vmul.f32 %v734, %v610
  %v737 = vsub.f32 %v724, %v735
  %v738 = vsub.f32 %v727, %v736
  %v739 = vmul.f32 %v737, %v737
  %v740 = vmul.f32 %v738, %v738
  %v741 = vsel %vm107, %v739, 0.0
  %742 = vadd.xlane.f32.xlu0 %v741
  %v743 = vpop.xlane.xlu0 %742
  %v744 = vsel %vm107, %v740, 0.0
  %745 = vadd.xlane.f32.xlu0 %v744
  %v746 = vpop.xlane.xlu0 %745
  %v747 = vmul.f32 %v743, %v610
  %v748 = vmul.f32 %v746, %v610
  %v749 = vadd.f32 %v747, 1e-05
  %v750 = vadd.f32 %v748, 1e-05
  %v751 = vrsqrt.pop %v749
  %v752 = vmul.f32 %v751, %v749
  %v753 = vmul.f32 %v752, %v751
  %v754 = vmul.f32 0.5, %v753
  %v755 = vsub.f32 1.5, %v754
  %v756 = vmul.f32 %v751, %v755
  %vm757 = vweird.f32 %v749
  %vm758 = vweird.f32 %v751
  %vm759 = vmor %vm757, %vm758
  %v760 = vsel %vm759, %v751, %v756
  %v761 = vrsqrt.pop %v750
  %v762 = vmul.f32 %v761, %v750
  %v763 = vmul.f32 %v762, %v761
  %v764 = vmul.f32 0.5, %v763
  %v765 = vsub.f32 1.5, %v764
  %v766 = vmul.f32 %v761, %v765
  %vm767 = vweird.f32 %v750
  %vm768 = vweird.f32 %v761
  %vm769 = vmor %vm767, %vm768
  %v770 = vsel %vm769, %v761, %v766
  %v771 = vmul.f32 %v737, %v760
  %v772 = vmul.f32 %v738, %v770
  %v773 = vperm.slane %v89, 6
  %v774 = vmul.f32 %v771, %v773
  %v775 = vmul.f32 %v772, %v773
  %v776 = vperm.slane %v89, 7
  %v777 = vadd.f32 %v774, %v776
  %v778 = vadd.f32 %v775, %v776
  %v779 = vadd.f32 %v777, %v655
  %v780 = vadd.f32 %v778, %v656
  %s781 = scalar_lea.vmem %s2, 64
  %v782 = vld [vmem:[%s781] sm:$0xff]
  %v783 = vld [vmem:[%s781 + $0x8] sm:$0xff]
  %v784 = vld [vmem:[%s781 + $0x10] sm:$0xff]
  %v785 = vld [vmem:[%s781 + $0x18] sm:$0xff]
  %v786 = vld [vmem:[%s781 + $0x20] sm:$0xff]
  %v787 = vld [vmem:[%s781 + $0x28] sm:$0xff]
  %v788 = vld [vmem:[%s781 + $0x30] sm:$0xff]
  %v789 = vld [vmem:[%s781 + $0x38] sm:$0xff]
  %s790 = scalar_lea.vmem %s4, 8
  %v791 = vld [vmem:[%s790] sm:$0xff]
  %s792 = scalar_lea.vmem %s3, 128
  %v793 = vld [vmem:[%s792] sm:$0xff]
  %v794 = vld [vmem:[%s792 + $0x8] sm:$0xff]
  %v795 = vld [vmem:[%s792 + $0x10] sm:$0xff]
  %v796 = vld [vmem:[%s792 + $0x18] sm:$0xff]
  %v797 = vld [vmem:[%s792 + $0x20] sm:$0xff]
  %v798 = vld [vmem:[%s792 + $0x28] sm:$0xff]
  %v799 = vld [vmem:[%s792 + $0x30] sm:$0xff]
  %v800 = vld [vmem:[%s792 + $0x38] sm:$0xff]
  %v801 = vld [vmem:[%s792 + $0x40] sm:$0xff]
  %v802 = vld [vmem:[%s792 + $0x48] sm:$0xff]
  %v803 = vld [vmem:[%s792 + $0x50] sm:$0xff]
  %v804 = vld [vmem:[%s792 + $0x58] sm:$0xff]
  %v805 = vld [vmem:[%s792 + $0x60] sm:$0xff]
  %v806 = vld [vmem:[%s792 + $0x68] sm:$0xff]
  %v807 = vld [vmem:[%s792 + $0x70] sm:$0xff]
  %v808 = vld [vmem:[%s792 + $0x78] sm:$0xff]
  %v809 = vperm.slane %v791, 0
  %v811 = vsel %vm107, %v779, 0
  %v814 = vsel %vm107, %v780, 0
  %816 = vmatpush.msra.mxu0 0.0
  %817 = vmatpush.msra.mxu0 0.0
  %818 = vmatpush.msra.mxu0 0.0
  %819 = vmatpush.msra.mxu0 0.0
  %820 = vmatpush.msra.mxu0 0.0
  %821 = vmatpush.msra.mxu0 0.0
  %822 = vmatpush.msra.mxu0 0.0
  %823 = vmatpush.msra.mxu0 0.0
  %824 = vmatpush.msra.mxu0 0.0
  %825 = vmatpush.msra.mxu0 0.0
  %826 = vmatpush.msra.mxu0 0.0
  %827 = vmatpush.msra.mxu0 0.0
  %828 = vmatpush.msra.mxu0 %v788
  %829 = vmatpush.msra.mxu0 %v786
  %830 = vmatpush.msra.mxu0 %v784
  %831 = vmatpush.msra.mxu0 %v782
  %832 = vmatmul.f32.gmra.mxu0 %v811
  %v833 = vpop.f32.mrf.mxu0
  %v834 = vadd.f32 %v809, %v833
  %835 = vmatmul.f32.gmra.mxu0 %v814
  %v836 = vpop.f32.mrf.mxu0
  %v837 = vadd.f32 %v809, %v836
  %838 = vdwg.mxu0
  %841 = vrot.lane.b32.xlu0 %v834, 96
  %v842 = vpop.permute.xlu0 %841
  %843 = vrot.lane.b32.xlu0 %v837, 96
  %v844 = vpop.permute.xlu0 %843
  %v845 = vsel %vm143, %v834, 0
  %v847 = vsel %vm143, %v837, 0
  %v849 = vsel %vm143, %v842, 0
  %v851 = vsel %vm143, %v844, 0
  %853 = vmatpush.xpose.msra.mxu0 0.0
  %854 = vmatpush.xpose.msra.mxu0 0.0
  %855 = vmatpush.xpose.msra.mxu0 0.0
  %856 = vmatpush.xpose.msra.mxu0 0.0
  %857 = vmatpush.xpose.msra.mxu0 0.0
  %858 = vmatpush.xpose.msra.mxu0 0.0
  %859 = vmatpush.xpose.msra.mxu0 0.0
  %860 = vmatpush.xpose.msra.mxu0 0.0
  %861 = vmatpush.xpose.msra.mxu0 0.0
  %862 = vmatpush.xpose.msra.mxu0 0.0
  %863 = vmatpush.xpose.msra.mxu0 0.0
  %864 = vmatpush.xpose.msra.mxu0 0.0
  %865 = vmatpush.xpose.msra.mxu0 0.0
  %866 = vmatpush.xpose.msra.mxu0 0.0
  %867 = vmatpush.xpose.msra.mxu0 %v851
  %868 = vmatpush.xpose.msra.mxu0 %v849
  %869 = vmatmul.f32.gmra.mxu0 %v845
  %v870 = vpop.f32.mrf.mxu0
  %v871 = vadd.f32 %v33, %v870
  %872 = vmatmul.f32.gmra.mxu0 %v847
  %v873 = vpop.f32.mrf.mxu0
  %v874 = vadd.f32 %v34, %v873
  %875 = vdwg.mxu0
  %v876 = vsel %vm175, %v871, -inf
  %877 = vmax.xlane.f32.xlu0 %v876
  %v878 = vpop.xlane.xlu0 %877
  %v879 = vsel %vm175, %v874, -inf
  %880 = vmax.xlane.f32.xlu0 %v879
  %v881 = vpop.xlane.xlu0 %880
  %v882 = vsub.f32 %v871, %v878
  %v883 = vsub.f32 %v874, %v881
  %v884 = vmul.f32 %v882, 1.442695
  %v885 = vpow.pop %v884
  %v886 = vmul.f32 %v883, 1.442695
  %v887 = vpow.pop %v886
  %v888 = vsel %vm175, %v885, 0.0
  %889 = vadd.xlane.f32.xlu0 %v888
  %v890 = vpop.xlane.xlu0 %889
  %v891 = vsel %vm175, %v887, 0.0
  %892 = vadd.xlane.f32.xlu0 %v891
  %v893 = vpop.xlane.xlu0 %892
  %v894 = vrcp.pop %v890
  %v895 = vrcp.pop %v893
  %v896 = vmul.f32 %v885, %v894
  %v897 = vmul.f32 %v887, %v895
  %898 = vrot.lane.b32.xlu0 %v834, 64
  %v899 = vpop.permute.xlu0 %898
  %900 = vrot.lane.b32.xlu0 %v837, 64
  %v901 = vpop.permute.xlu0 %900
  %v905 = vsel %vm175, %v896, 0
  %v908 = vsel %vm175, %v897, 0
  %910 = vmatpush.msra.mxu0 0.0
  %911 = vmatpush.msra.mxu0 0.0
  %912 = vmatpush.msra.mxu0 0.0
  %913 = vmatpush.msra.mxu0 0.0
  %914 = vmatpush.msra.mxu0 0.0
  %915 = vmatpush.msra.mxu0 0.0
  %916 = vmatpush.msra.mxu0 0.0
  %917 = vmatpush.msra.mxu0 0.0
  %918 = vmatpush.msra.mxu0 0.0
  %919 = vmatpush.msra.mxu0 0.0
  %920 = vmatpush.msra.mxu0 0.0
  %921 = vmatpush.msra.mxu0 0.0
  %922 = vmatpush.msra.mxu0 0.0
  %923 = vmatpush.msra.mxu0 0.0
  %924 = vmatpush.msra.mxu0 %v901
  %925 = vmatpush.msra.mxu0 %v899
  %926 = vmatmul.f32.gmra.mxu0 %v905
  %v927 = vpop.f32.mrf.mxu0
  %v928 = vadd.f32 0.0, %v927
  %929 = vmatmul.f32.gmra.mxu0 %v908
  %v930 = vpop.f32.mrf.mxu0
  %v931 = vadd.f32 0.0, %v930
  %932 = vdwg.mxu0
  %933 = vrot.lane.b32.xlu0 %v834, 120
  %v934 = vpop.permute.xlu0 %933
  %935 = vrot.lane.b32.xlu0 %v837, 120
  %v936 = vpop.permute.xlu0 %935
  %937 = vrot.lane.b32.xlu0 %v834, 88
  %v938 = vpop.permute.xlu0 %937
  %939 = vrot.lane.b32.xlu0 %v837, 88
  %v940 = vpop.permute.xlu0 %939
  %v941 = vsel %vm143, %v934, 0
  %v943 = vsel %vm143, %v936, 0
  %v945 = vsel %vm143, %v938, 0
  %v947 = vsel %vm143, %v940, 0
  %949 = vmatpush.xpose.msra.mxu0 0.0
  %950 = vmatpush.xpose.msra.mxu0 0.0
  %951 = vmatpush.xpose.msra.mxu0 0.0
  %952 = vmatpush.xpose.msra.mxu0 0.0
  %953 = vmatpush.xpose.msra.mxu0 0.0
  %954 = vmatpush.xpose.msra.mxu0 0.0
  %955 = vmatpush.xpose.msra.mxu0 0.0
  %956 = vmatpush.xpose.msra.mxu0 0.0
  %957 = vmatpush.xpose.msra.mxu0 0.0
  %958 = vmatpush.xpose.msra.mxu0 0.0
  %959 = vmatpush.xpose.msra.mxu0 0.0
  %960 = vmatpush.xpose.msra.mxu0 0.0
  %961 = vmatpush.xpose.msra.mxu0 0.0
  %962 = vmatpush.xpose.msra.mxu0 0.0
  %963 = vmatpush.xpose.msra.mxu0 %v947
  %964 = vmatpush.xpose.msra.mxu0 %v945
  %965 = vmatmul.f32.gmra.mxu0 %v941
  %v966 = vpop.f32.mrf.mxu0
  %v967 = vadd.f32 %v33, %v966
  %968 = vmatmul.f32.gmra.mxu0 %v943
  %v969 = vpop.f32.mrf.mxu0
  %v970 = vadd.f32 %v34, %v969
  %971 = vdwg.mxu0
  %v972 = vsel %vm175, %v967, -inf
  %973 = vmax.xlane.f32.xlu0 %v972
  %v974 = vpop.xlane.xlu0 %973
  %v975 = vsel %vm175, %v970, -inf
  %976 = vmax.xlane.f32.xlu0 %v975
  %v977 = vpop.xlane.xlu0 %976
  %v978 = vsub.f32 %v967, %v974
  %v979 = vsub.f32 %v970, %v977
  %v980 = vmul.f32 %v978, 1.442695
  %v981 = vpow.pop %v980
  %v982 = vmul.f32 %v979, 1.442695
  %v983 = vpow.pop %v982
  %v984 = vsel %vm175, %v981, 0.0
  %985 = vadd.xlane.f32.xlu0 %v984
  %v986 = vpop.xlane.xlu0 %985
  %v987 = vsel %vm175, %v983, 0.0
  %988 = vadd.xlane.f32.xlu0 %v987
  %v989 = vpop.xlane.xlu0 %988
  %v990 = vrcp.pop %v986
  %v991 = vrcp.pop %v989
  %v992 = vmul.f32 %v981, %v990
  %v993 = vmul.f32 %v983, %v991
  %994 = vrot.lane.b32.xlu0 %v834, 56
  %v995 = vpop.permute.xlu0 %994
  %996 = vrot.lane.b32.xlu0 %v837, 56
  %v997 = vpop.permute.xlu0 %996
  %v1001 = vsel %vm175, %v992, 0
  %v1004 = vsel %vm175, %v993, 0
  %1006 = vmatpush.msra.mxu0 0.0
  %1007 = vmatpush.msra.mxu0 0.0
  %1008 = vmatpush.msra.mxu0 0.0
  %1009 = vmatpush.msra.mxu0 0.0
  %1010 = vmatpush.msra.mxu0 0.0
  %1011 = vmatpush.msra.mxu0 0.0
  %1012 = vmatpush.msra.mxu0 0.0
  %1013 = vmatpush.msra.mxu0 0.0
  %1014 = vmatpush.msra.mxu0 0.0
  %1015 = vmatpush.msra.mxu0 0.0
  %1016 = vmatpush.msra.mxu0 0.0
  %1017 = vmatpush.msra.mxu0 0.0
  %1018 = vmatpush.msra.mxu0 0.0
  %1019 = vmatpush.msra.mxu0 0.0
  %1020 = vmatpush.msra.mxu0 %v997
  %1021 = vmatpush.msra.mxu0 %v995
  %1022 = vmatmul.f32.gmra.mxu0 %v1001
  %v1023 = vpop.f32.mrf.mxu0
  %v1024 = vadd.f32 0.0, %v1023
  %1025 = vmatmul.f32.gmra.mxu0 %v1004
  %v1026 = vpop.f32.mrf.mxu0
  %v1027 = vadd.f32 0.0, %v1026
  %1028 = vdwg.mxu0
  %1029 = vrot.lane.b32.xlu0 %v834, 112
  %v1030 = vpop.permute.xlu0 %1029
  %1031 = vrot.lane.b32.xlu0 %v837, 112
  %v1032 = vpop.permute.xlu0 %1031
  %1033 = vrot.lane.b32.xlu0 %v834, 80
  %v1034 = vpop.permute.xlu0 %1033
  %1035 = vrot.lane.b32.xlu0 %v837, 80
  %v1036 = vpop.permute.xlu0 %1035
  %v1037 = vsel %vm143, %v1030, 0
  %v1039 = vsel %vm143, %v1032, 0
  %v1041 = vsel %vm143, %v1034, 0
  %v1043 = vsel %vm143, %v1036, 0
  %1045 = vmatpush.xpose.msra.mxu0 0.0
  %1046 = vmatpush.xpose.msra.mxu0 0.0
  %1047 = vmatpush.xpose.msra.mxu0 0.0
  %1048 = vmatpush.xpose.msra.mxu0 0.0
  %1049 = vmatpush.xpose.msra.mxu0 0.0
  %1050 = vmatpush.xpose.msra.mxu0 0.0
  %1051 = vmatpush.xpose.msra.mxu0 0.0
  %1052 = vmatpush.xpose.msra.mxu0 0.0
  %1053 = vmatpush.xpose.msra.mxu0 0.0
  %1054 = vmatpush.xpose.msra.mxu0 0.0
  %1055 = vmatpush.xpose.msra.mxu0 0.0
  %1056 = vmatpush.xpose.msra.mxu0 0.0
  %1057 = vmatpush.xpose.msra.mxu0 0.0
  %1058 = vmatpush.xpose.msra.mxu0 0.0
  %1059 = vmatpush.xpose.msra.mxu0 %v1043
  %1060 = vmatpush.xpose.msra.mxu0 %v1041
  %1061 = vmatmul.f32.gmra.mxu0 %v1037
  %v1062 = vpop.f32.mrf.mxu0
  %v1063 = vadd.f32 %v33, %v1062
  %1064 = vmatmul.f32.gmra.mxu0 %v1039
  %v1065 = vpop.f32.mrf.mxu0
  %v1066 = vadd.f32 %v34, %v1065
  %1067 = vdwg.mxu0
  %v1068 = vsel %vm175, %v1063, -inf
  %1069 = vmax.xlane.f32.xlu0 %v1068
  %v1070 = vpop.xlane.xlu0 %1069
  %v1071 = vsel %vm175, %v1066, -inf
  %1072 = vmax.xlane.f32.xlu0 %v1071
  %v1073 = vpop.xlane.xlu0 %1072
  %v1074 = vsub.f32 %v1063, %v1070
  %v1075 = vsub.f32 %v1066, %v1073
  %v1076 = vmul.f32 %v1074, 1.442695
  %v1077 = vpow.pop %v1076
  %v1078 = vmul.f32 %v1075, 1.442695
  %v1079 = vpow.pop %v1078
  %v1080 = vsel %vm175, %v1077, 0.0
  %1081 = vadd.xlane.f32.xlu0 %v1080
  %v1082 = vpop.xlane.xlu0 %1081
  %v1083 = vsel %vm175, %v1079, 0.0
  %1084 = vadd.xlane.f32.xlu0 %v1083
  %v1085 = vpop.xlane.xlu0 %1084
  %v1086 = vrcp.pop %v1082
  %v1087 = vrcp.pop %v1085
  %v1088 = vmul.f32 %v1077, %v1086
  %v1089 = vmul.f32 %v1079, %v1087
  %1090 = vrot.lane.b32.xlu0 %v834, 48
  %v1091 = vpop.permute.xlu0 %1090
  %1092 = vrot.lane.b32.xlu0 %v837, 48
  %v1093 = vpop.permute.xlu0 %1092
  %v1097 = vsel %vm175, %v1088, 0
  %v1100 = vsel %vm175, %v1089, 0
  %1102 = vmatpush.msra.mxu0 0.0
  %1103 = vmatpush.msra.mxu0 0.0
  %1104 = vmatpush.msra.mxu0 0.0
  %1105 = vmatpush.msra.mxu0 0.0
  %1106 = vmatpush.msra.mxu0 0.0
  %1107 = vmatpush.msra.mxu0 0.0
  %1108 = vmatpush.msra.mxu0 0.0
  %1109 = vmatpush.msra.mxu0 0.0
  %1110 = vmatpush.msra.mxu0 0.0
  %1111 = vmatpush.msra.mxu0 0.0
  %1112 = vmatpush.msra.mxu0 0.0
  %1113 = vmatpush.msra.mxu0 0.0
  %1114 = vmatpush.msra.mxu0 0.0
  %1115 = vmatpush.msra.mxu0 0.0
  %1116 = vmatpush.msra.mxu0 %v1093
  %1117 = vmatpush.msra.mxu0 %v1091
  %1118 = vmatmul.f32.gmra.mxu0 %v1097
  %v1119 = vpop.f32.mrf.mxu0
  %v1120 = vadd.f32 0.0, %v1119
  %1121 = vmatmul.f32.gmra.mxu0 %v1100
  %v1122 = vpop.f32.mrf.mxu0
  %v1123 = vadd.f32 0.0, %v1122
  %1124 = vdwg.mxu0
  %1125 = vrot.lane.b32.xlu0 %v834, 104
  %v1126 = vpop.permute.xlu0 %1125
  %1127 = vrot.lane.b32.xlu0 %v837, 104
  %v1128 = vpop.permute.xlu0 %1127
  %1129 = vrot.lane.b32.xlu0 %v834, 72
  %v1130 = vpop.permute.xlu0 %1129
  %1131 = vrot.lane.b32.xlu0 %v837, 72
  %v1132 = vpop.permute.xlu0 %1131
  %v1133 = vsel %vm143, %v1126, 0
  %v1135 = vsel %vm143, %v1128, 0
  %v1137 = vsel %vm143, %v1130, 0
  %v1139 = vsel %vm143, %v1132, 0
  %1141 = vmatpush.xpose.msra.mxu0 0.0
  %1142 = vmatpush.xpose.msra.mxu0 0.0
  %1143 = vmatpush.xpose.msra.mxu0 0.0
  %1144 = vmatpush.xpose.msra.mxu0 0.0
  %1145 = vmatpush.xpose.msra.mxu0 0.0
  %1146 = vmatpush.xpose.msra.mxu0 0.0
  %1147 = vmatpush.xpose.msra.mxu0 0.0
  %1148 = vmatpush.xpose.msra.mxu0 0.0
  %1149 = vmatpush.xpose.msra.mxu0 0.0
  %1150 = vmatpush.xpose.msra.mxu0 0.0
  %1151 = vmatpush.xpose.msra.mxu0 0.0
  %1152 = vmatpush.xpose.msra.mxu0 0.0
  %1153 = vmatpush.xpose.msra.mxu0 0.0
  %1154 = vmatpush.xpose.msra.mxu0 0.0
  %1155 = vmatpush.xpose.msra.mxu0 %v1139
  %1156 = vmatpush.xpose.msra.mxu0 %v1137
  %1157 = vmatmul.f32.gmra.mxu0 %v1133
  %v1158 = vpop.f32.mrf.mxu0
  %v1159 = vadd.f32 %v33, %v1158
  %1160 = vmatmul.f32.gmra.mxu0 %v1135
  %v1161 = vpop.f32.mrf.mxu0
  %v1162 = vadd.f32 %v34, %v1161
  %1163 = vdwg.mxu0
  %v1164 = vsel %vm175, %v1159, -inf
  %1165 = vmax.xlane.f32.xlu0 %v1164
  %v1166 = vpop.xlane.xlu0 %1165
  %v1167 = vsel %vm175, %v1162, -inf
  %1168 = vmax.xlane.f32.xlu0 %v1167
  %v1169 = vpop.xlane.xlu0 %1168
  %v1170 = vsub.f32 %v1159, %v1166
  %v1171 = vsub.f32 %v1162, %v1169
  %v1172 = vmul.f32 %v1170, 1.442695
  %v1173 = vpow.pop %v1172
  %v1174 = vmul.f32 %v1171, 1.442695
  %v1175 = vpow.pop %v1174
  %v1176 = vsel %vm175, %v1173, 0.0
  %1177 = vadd.xlane.f32.xlu0 %v1176
  %v1178 = vpop.xlane.xlu0 %1177
  %v1179 = vsel %vm175, %v1175, 0.0
  %1180 = vadd.xlane.f32.xlu0 %v1179
  %v1181 = vpop.xlane.xlu0 %1180
  %v1182 = vrcp.pop %v1178
  %v1183 = vrcp.pop %v1181
  %v1184 = vmul.f32 %v1173, %v1182
  %v1185 = vmul.f32 %v1175, %v1183
  %1186 = vrot.lane.b32.xlu0 %v834, 40
  %v1187 = vpop.permute.xlu0 %1186
  %1188 = vrot.lane.b32.xlu0 %v837, 40
  %v1189 = vpop.permute.xlu0 %1188
  %v1193 = vsel %vm175, %v1184, 0
  %v1196 = vsel %vm175, %v1185, 0
  %1198 = vmatpush.msra.mxu0 0.0
  %1199 = vmatpush.msra.mxu0 0.0
  %1200 = vmatpush.msra.mxu0 0.0
  %1201 = vmatpush.msra.mxu0 0.0
  %1202 = vmatpush.msra.mxu0 0.0
  %1203 = vmatpush.msra.mxu0 0.0
  %1204 = vmatpush.msra.mxu0 0.0
  %1205 = vmatpush.msra.mxu0 0.0
  %1206 = vmatpush.msra.mxu0 0.0
  %1207 = vmatpush.msra.mxu0 0.0
  %1208 = vmatpush.msra.mxu0 0.0
  %1209 = vmatpush.msra.mxu0 0.0
  %1210 = vmatpush.msra.mxu0 0.0
  %1211 = vmatpush.msra.mxu0 0.0
  %1212 = vmatpush.msra.mxu0 %v1189
  %1213 = vmatpush.msra.mxu0 %v1187
  %1214 = vmatmul.f32.gmra.mxu0 %v1193
  %v1215 = vpop.f32.mrf.mxu0
  %v1216 = vadd.f32 0.0, %v1215
  %1217 = vmatmul.f32.gmra.mxu0 %v1196
  %v1218 = vpop.f32.mrf.mxu0
  %v1219 = vadd.f32 0.0, %v1218
  %1220 = vdwg.mxu0
  %1223 = vrot.lane.b32.xlu0 %v1024, 8
  %v1224 = vpop.permute.xlu0 %1223
  %1225 = vrot.lane.b32.xlu0 %v1027, 8
  %v1226 = vpop.permute.xlu0 %1225
  %1231 = vrot.lane.b32.xlu0 %v1120, 16
  %v1232 = vpop.permute.xlu0 %1231
  %1233 = vrot.lane.b32.xlu0 %v1123, 16
  %v1234 = vpop.permute.xlu0 %1233
  %1239 = vrot.lane.b32.xlu0 %v1216, 24
  %v1240 = vpop.permute.xlu0 %1239
  %1241 = vrot.lane.b32.xlu0 %v1219, 24
  %v1242 = vpop.permute.xlu0 %1241
  %v1245 = vsel %vm143, %v928, %v1224
  %v1246 = vsel %vm143, %v931, %v1226
  %v1247 = vsel %vm175, %v1245, %v1232
  %v1248 = vsel %vm175, %v1246, %v1234
  %v1249 = vsel %vm549, %v1247, %v1240
  %v1250 = vsel %vm549, %v1248, %v1242
  %v1251 = vperm.slane %v791, 1
  %1256 = vrot.lane.b32.xlu0 %v782, 32
  %v1257 = vpop.permute.xlu0 %1256
  %1258 = vrot.lane.b32.xlu0 %v784, 32
  %v1259 = vpop.permute.xlu0 %1258
  %1260 = vrot.lane.b32.xlu0 %v786, 32
  %v1261 = vpop.permute.xlu0 %1260
  %1262 = vrot.lane.b32.xlu0 %v788, 32
  %v1263 = vpop.permute.xlu0 %1262
  %v1269 = vsel %vm107, %v1249, 0
  %v1272 = vsel %vm107, %v1250, 0
  %1274 = vmatpush.msra.mxu0 0.0
  %1275 = vmatpush.msra.mxu0 0.0
  %1276 = vmatpush.msra.mxu0 0.0
  %1277 = vmatpush.msra.mxu0 0.0
  %1278 = vmatpush.msra.mxu0 0.0
  %1279 = vmatpush.msra.mxu0 0.0
  %1280 = vmatpush.msra.mxu0 0.0
  %1281 = vmatpush.msra.mxu0 0.0
  %1282 = vmatpush.msra.mxu0 0.0
  %1283 = vmatpush.msra.mxu0 0.0
  %1284 = vmatpush.msra.mxu0 0.0
  %1285 = vmatpush.msra.mxu0 0.0
  %1286 = vmatpush.msra.mxu0 %v1263
  %1287 = vmatpush.msra.mxu0 %v1261
  %1288 = vmatpush.msra.mxu0 %v1259
  %1289 = vmatpush.msra.mxu0 %v1257
  %1290 = vmatmul.f32.gmra.mxu0 %v1269
  %v1291 = vpop.f32.mrf.mxu0
  %v1292 = vadd.f32 %v1251, %v1291
  %1293 = vmatmul.f32.gmra.mxu0 %v1272
  %v1294 = vpop.f32.mrf.mxu0
  %v1295 = vadd.f32 %v1251, %v1294
  %1296 = vdwg.mxu0
  %v1297 = vsel %vm107, %v1292, 0.0
  %1298 = vadd.xlane.f32.xlu0 %v1297
  %v1299 = vpop.xlane.xlu0 %1298
  %v1300 = vsel %vm107, %v1295, 0.0
  %1301 = vadd.xlane.f32.xlu0 %v1300
  %v1302 = vpop.xlane.xlu0 %1301
  %v1303 = vmul.f32 %v1299, %v610
  %v1304 = vmul.f32 %v1302, %v610
  %v1305 = vsub.f32 %v1292, %v1303
  %v1306 = vsub.f32 %v1295, %v1304
  %v1307 = vmul.f32 %v1305, %v1305
  %v1308 = vmul.f32 %v1306, %v1306
  %v1309 = vsel %vm107, %v1307, 0.0
  %1310 = vadd.xlane.f32.xlu0 %v1309
  %v1311 = vpop.xlane.xlu0 %1310
  %v1312 = vsel %vm107, %v1308, 0.0
  %1313 = vadd.xlane.f32.xlu0 %v1312
  %v1314 = vpop.xlane.xlu0 %1313
  %v1315 = vmul.f32 %v1311, %v610
  %v1316 = vmul.f32 %v1314, %v610
  %v1317 = vadd.f32 %v1315, 1e-05
  %v1318 = vadd.f32 %v1316, 1e-05
  %v1319 = vrsqrt.pop %v1317
  %v1320 = vmul.f32 %v1319, %v1317
  %v1321 = vmul.f32 %v1320, %v1319
  %v1322 = vmul.f32 0.5, %v1321
  %v1323 = vsub.f32 1.5, %v1322
  %v1324 = vmul.f32 %v1319, %v1323
  %vm1325 = vweird.f32 %v1317
  %vm1326 = vweird.f32 %v1319
  %vm1327 = vmor %vm1325, %vm1326
  %v1328 = vsel %vm1327, %v1319, %v1324
  %v1329 = vrsqrt.pop %v1318
  %v1330 = vmul.f32 %v1329, %v1318
  %v1331 = vmul.f32 %v1330, %v1329
  %v1332 = vmul.f32 0.5, %v1331
  %v1333 = vsub.f32 1.5, %v1332
  %v1334 = vmul.f32 %v1329, %v1333
  %vm1335 = vweird.f32 %v1318
  %vm1336 = vweird.f32 %v1329
  %vm1337 = vmor %vm1335, %vm1336
  %v1338 = vsel %vm1337, %v1329, %v1334
  %v1339 = vmul.f32 %v1305, %v1328
  %v1340 = vmul.f32 %v1306, %v1338
  %v1341 = vperm.slane %v791, 2
  %v1342 = vmul.f32 %v1339, %v1341
  %v1343 = vmul.f32 %v1340, %v1341
  %v1344 = vperm.slane %v791, 3
  %v1345 = vadd.f32 %v1342, %v1344
  %v1346 = vadd.f32 %v1343, %v1344
  %v1347 = vadd.f32 %v1345, %v779
  %v1348 = vadd.f32 %v1346, %v780
  %v1349 = vperm.slane %v791, 4
  %v1351 = vsel %vm107, %v1347, 0
  %v1354 = vsel %vm107, %v1348, 0
  %1356 = vmatpush.msra.mxu0 0.0
  %1357 = vmatpush.msra.mxu0 0.0
  %1358 = vmatpush.msra.mxu0 0.0
  %1359 = vmatpush.msra.mxu0 0.0
  %1360 = vmatpush.msra.mxu0 0.0
  %1361 = vmatpush.msra.mxu0 0.0
  %1362 = vmatpush.msra.mxu0 0.0
  %1363 = vmatpush.msra.mxu0 0.0
  %1364 = vmatpush.msra.mxu0 0.0
  %1365 = vmatpush.msra.mxu0 0.0
  %1366 = vmatpush.msra.mxu0 0.0
  %1367 = vmatpush.msra.mxu0 0.0
  %1368 = vmatpush.msra.mxu0 %v789
  %1369 = vmatpush.msra.mxu0 %v787
  %1370 = vmatpush.msra.mxu0 %v785
  %1371 = vmatpush.msra.mxu0 %v783
  %1372 = vmatmul.f32.gmra.mxu0 %v1351
  %v1373 = vpop.f32.mrf.mxu0
  %v1374 = vadd.f32 %v1349, %v1373
  %1375 = vmatmul.f32.gmra.mxu0 %v1354
  %v1376 = vpop.f32.mrf.mxu0
  %v1377 = vadd.f32 %v1349, %v1376
  %1378 = vdwg.mxu0
  %v1379 = vmul.f32 %v1374, 0.5
  %v1380 = vmul.f32 %v1377, 0.5
  %v1381 = vmul.f32 %v1374, 0.044715
  %v1382 = vmul.f32 %v1377, 0.044715
  %v1383 = vmul.f32 %v1381, %v1374
  %v1384 = vmul.f32 %v1382, %v1377
  %v1385 = vmul.f32 %v1383, %v1374
  %v1386 = vmul.f32 %v1384, %v1377
  %v1387 = vadd.f32 %v1374, %v1385
  %v1388 = vadd.f32 %v1377, %v1386
  %v1389 = vmul.f32 %v1387, 0.7978846
  %v1390 = vmul.f32 %v1388, 0.7978846
  %v1391 = vtanh.pop %v1389
  %v1392 = vtanh.pop %v1390
  %v1393 = vadd.f32 %v1391, 1.0
  %v1394 = vadd.f32 %v1392, 1.0
  %v1395 = vmul.f32 %v1379, %v1393
  %v1396 = vmul.f32 %v1380, %v1394
  %v1397 = vperm.slane %v791, 5
  %1398 = vmatpush.msra.mxu0 %v808
  %1399 = vmatpush.msra.mxu0 %v807
  %1400 = vmatpush.msra.mxu0 %v806
  %1401 = vmatpush.msra.mxu0 %v805
  %1402 = vmatpush.msra.mxu0 %v804
  %1403 = vmatpush.msra.mxu0 %v803
  %1404 = vmatpush.msra.mxu0 %v802
  %1405 = vmatpush.msra.mxu0 %v801
  %1406 = vmatpush.msra.mxu0 %v800
  %1407 = vmatpush.msra.mxu0 %v799
  %1408 = vmatpush.msra.mxu0 %v798
  %1409 = vmatpush.msra.mxu0 %v797
  %1410 = vmatpush.msra.mxu0 %v796
  %1411 = vmatpush.msra.mxu0 %v795
  %1412 = vmatpush.msra.mxu0 %v794
  %1413 = vmatpush.msra.mxu0 %v793
  %1414 = vmatmul.f32.gmra.mxu0 %v1395
  %v1415 = vpop.f32.mrf.mxu0
  %v1416 = vadd.f32 %v1397, %v1415
  %1417 = vmatmul.f32.gmra.mxu0 %v1396
  %v1418 = vpop.f32.mrf.mxu0
  %v1419 = vadd.f32 %v1397, %v1418
  %1420 = vdwg.mxu0
  %v1421 = vsel %vm107, %v1416, 0.0
  %1422 = vadd.xlane.f32.xlu0 %v1421
  %v1423 = vpop.xlane.xlu0 %1422
  %v1424 = vsel %vm107, %v1419, 0.0
  %1425 = vadd.xlane.f32.xlu0 %v1424
  %v1426 = vpop.xlane.xlu0 %1425
  %v1427 = vmul.f32 %v1423, %v610
  %v1428 = vmul.f32 %v1426, %v610
  %v1429 = vsub.f32 %v1416, %v1427
  %v1430 = vsub.f32 %v1419, %v1428
  %v1431 = vmul.f32 %v1429, %v1429
  %v1432 = vmul.f32 %v1430, %v1430
  %v1433 = vsel %vm107, %v1431, 0.0
  %1434 = vadd.xlane.f32.xlu0 %v1433
  %v1435 = vpop.xlane.xlu0 %1434
  %v1436 = vsel %vm107, %v1432, 0.0
  %1437 = vadd.xlane.f32.xlu0 %v1436
  %v1438 = vpop.xlane.xlu0 %1437
  %v1439 = vmul.f32 %v1435, %v610
  %v1440 = vmul.f32 %v1438, %v610
  %v1441 = vadd.f32 %v1439, 1e-05
  %v1442 = vadd.f32 %v1440, 1e-05
  %v1443 = vrsqrt.pop %v1441
  %v1444 = vmul.f32 %v1443, %v1441
  %v1445 = vmul.f32 %v1444, %v1443
  %v1446 = vmul.f32 0.5, %v1445
  %v1447 = vsub.f32 1.5, %v1446
  %v1448 = vmul.f32 %v1443, %v1447
  %vm1449 = vweird.f32 %v1441
  %vm1450 = vweird.f32 %v1443
  %vm1451 = vmor %vm1449, %vm1450
  %v1452 = vsel %vm1451, %v1443, %v1448
  %v1453 = vrsqrt.pop %v1442
  %v1454 = vmul.f32 %v1453, %v1442
  %v1455 = vmul.f32 %v1454, %v1453
  %v1456 = vmul.f32 0.5, %v1455
  %v1457 = vsub.f32 1.5, %v1456
  %v1458 = vmul.f32 %v1453, %v1457
  %vm1459 = vweird.f32 %v1442
  %vm1460 = vweird.f32 %v1453
  %vm1461 = vmor %vm1459, %vm1460
  %v1462 = vsel %vm1461, %v1453, %v1458
  %v1463 = vmul.f32 %v1429, %v1452
  %v1464 = vmul.f32 %v1430, %v1462
  %v1465 = vperm.slane %v791, 6
  %v1466 = vmul.f32 %v1463, %v1465
  %v1467 = vmul.f32 %v1464, %v1465
  %v1468 = vperm.slane %v791, 7
  %v1469 = vadd.f32 %v1466, %v1468
  %v1470 = vadd.f32 %v1467, %v1468
  %v1471 = vadd.f32 %v1469, %v1347
  %v1472 = vadd.f32 %v1470, %v1348
  %s1473 = scalar_lea.vmem %s4, 16
  %v1474 = vld [vmem:[%s1473] sm:$0xff]
  %v1475 = vsel %vm107, %v1471, 0.0
  %1476 = vadd.xlane.f32.xlu0 %v1475
  %v1477 = vpop.xlane.xlu0 %1476
  %v1478 = vsel %vm107, %v1472, 0.0
  %1479 = vadd.xlane.f32.xlu0 %v1478
  %v1480 = vpop.xlane.xlu0 %1479
  %v1481 = vmul.f32 %v1477, %v610
  %v1482 = vmul.f32 %v1480, %v610
  %v1483 = vsub.f32 %v1471, %v1481
  %v1484 = vsub.f32 %v1472, %v1482
  %v1485 = vmul.f32 %v1483, %v1483
  %v1486 = vmul.f32 %v1484, %v1484
  %v1487 = vsel %vm107, %v1485, 0.0
  %1488 = vadd.xlane.f32.xlu0 %v1487
  %v1489 = vpop.xlane.xlu0 %1488
  %v1490 = vsel %vm107, %v1486, 0.0
  %1491 = vadd.xlane.f32.xlu0 %v1490
  %v1492 = vpop.xlane.xlu0 %1491
  %v1493 = vmul.f32 %v1489, %v610
  %v1494 = vmul.f32 %v1492, %v610
  %v1495 = vadd.f32 %v1493, 1e-05
  %v1496 = vadd.f32 %v1494, 1e-05
  %v1497 = vrsqrt.pop %v1495
  %v1498 = vmul.f32 %v1497, %v1495
  %v1499 = vmul.f32 %v1498, %v1497
  %v1500 = vmul.f32 0.5, %v1499
  %v1501 = vsub.f32 1.5, %v1500
  %v1502 = vmul.f32 %v1497, %v1501
  %vm1503 = vweird.f32 %v1495
  %vm1504 = vweird.f32 %v1497
  %vm1505 = vmor %vm1503, %vm1504
  %v1506 = vsel %vm1505, %v1497, %v1502
  %v1507 = vrsqrt.pop %v1496
  %v1508 = vmul.f32 %v1507, %v1496
  %v1509 = vmul.f32 %v1508, %v1507
  %v1510 = vmul.f32 0.5, %v1509
  %v1511 = vsub.f32 1.5, %v1510
  %v1512 = vmul.f32 %v1507, %v1511
  %vm1513 = vweird.f32 %v1496
  %vm1514 = vweird.f32 %v1507
  %vm1515 = vmor %vm1513, %vm1514
  %v1516 = vsel %vm1515, %v1507, %v1512
  %v1517 = vmul.f32 %v1483, %v1506
  %v1518 = vmul.f32 %v1484, %v1516
  %v1519 = vperm.slane %v1474, 0
  %v1520 = vmul.f32 %v1517, %v1519
  %v1521 = vmul.f32 %v1518, %v1519
  %v1522 = vperm.slane %v1474, 1
  %v1523 = vadd.f32 %v1520, %v1522
  %v1524 = vadd.f32 %v1521, %v1522
  %v1525 = vld [vmem:[%s5] sm:$0xff]
  %v1526 = vld [vmem:[%s5 + $0x8] sm:$0xff]
  %v1527 = vld [vmem:[%s5 + $0x10] sm:$0xff]
  %v1528 = vld [vmem:[%s5 + $0x18] sm:$0xff]
  %v1530 = vsel %vm107, %v1523, 0
  %v1533 = vsel %vm107, %v1524, 0
  %1535 = vmatpush.msra.mxu0 0.0
  %1536 = vmatpush.msra.mxu0 0.0
  %1537 = vmatpush.msra.mxu0 0.0
  %1538 = vmatpush.msra.mxu0 0.0
  %1539 = vmatpush.msra.mxu0 0.0
  %1540 = vmatpush.msra.mxu0 0.0
  %1541 = vmatpush.msra.mxu0 0.0
  %1542 = vmatpush.msra.mxu0 0.0
  %1543 = vmatpush.msra.mxu0 0.0
  %1544 = vmatpush.msra.mxu0 0.0
  %1545 = vmatpush.msra.mxu0 0.0
  %1546 = vmatpush.msra.mxu0 0.0
  %1547 = vmatpush.msra.mxu0 %v1528
  %1548 = vmatpush.msra.mxu0 %v1527
  %1549 = vmatpush.msra.mxu0 %v1526
  %1550 = vmatpush.msra.mxu0 %v1525
  %1551 = vmatmul.f32.gmra.mxu0 %v1530
  %v1552 = vpop.f32.mrf.mxu0
  %v1553 = vadd.f32 0.0, %v1552
  %1554 = vmatmul.f32.gmra.mxu0 %v1533
  %v1555 = vpop.f32.mrf.mxu0
  %v1556 = vadd.f32 0.0, %v1555
  %1557 = vdwg.mxu0
  %1558 = vst [vmem:[%s6] sm:$0xff] %v1553
  %1559 = vst [vmem:[%s6 + $0x8] sm:$0xff] %v1556
  // Predicated region
  $region26: #{decoder_only_transformer.1} parent=0 // pred_check
    _
  $region27: #{decoder_only_transformer.1} parent=0 // pred_check_branch
    %1561 = sbr.rel (0) target = $region29
  $region28: #{decoder_only_transformer.1} parent=0 // pred_region
    _
  $region29: #{decoder_only_transformer.1} parent=0 // pred_fallthru
    _
  // Predicated region
  $region30: #{decoder_only_transformer.1} parent=0 // pred_check
    _
  $region31: #{decoder_only_transformer.1} parent=0 // pred_check_branch
    %1563 = sbr.rel (0) target = $region33
  $region32: #{decoder_only_transformer.1} parent=0 // pred_region
    _
  $region33: #{decoder_only_transformer.1} parent=0 // pred_fallthru
    _

</llo_original>
